<compile_context>
chip_gen: v7x
topology: tpu7x:2x2x1
jax: 0.10.0
libtpu: 0.0.40
codegen_flags: <defaults>
</compile_context>

<pallas_src>
import jax
import jax.numpy as jnp
from jax.experimental import pallas as pl
from jax.experimental.pallas import tpu as pltpu

L_COORD = 5.0
L_NOOBJ = 0.5
S = 7
B = 2          # boxes per cell (fixed by the 25/30 channel layout)
TILE_N = 512   # rows per grid step (multiple of 8)


def _yolo_loss_kernel(label_ref, pred_ref, out_ref, acc_ref):
    """label_ref/pred_ref: (TILE_N, 30) blocks; out_ref: (1,) SMEM; acc_ref: VMEM."""
    pid = pl.program_id(0)

    @pl.when(pid == 0)
    def _():
        acc_ref[...] = jnp.zeros_like(acc_ref)

    lab = label_ref[...].astype(jnp.float32)
    prd = pred_ref[...].astype(jnp.float32)

    # Static per-channel weights (constant-folded):
    #   ch 0..19  : class scores -> obj weight 1,        noobj weight 0
    #   ch 20, 25 : confidences  -> obj weight 1,        noobj weight L_NOOBJ
    #   ch 21..24,
    #   ch 26..29 : box coords   -> obj weight L_COORD,  noobj weight 0
    ch = jax.lax.broadcasted_iota(jnp.int32, (1, 30), 1)
    is_conf = jnp.logical_or(ch == 20, ch == 25)
    is_coord = jnp.logical_and(ch >= 21, jnp.logical_not(is_conf))
    w_obj = jnp.where(is_coord, jnp.float32(L_COORD), jnp.float32(1.0))
    w_noobj = jnp.where(is_conf, jnp.float32(L_NOOBJ), jnp.float32(0.0))

    # Per-row object mask (channel 20 holds the ground-truth confidence).
    obj = (lab[:, 20:21] >= 0.9).astype(jnp.float32)        # (TILE_N, 1)
    w = obj * w_obj + (1.0 - obj) * w_noobj                 # (TILE_N, 30)

    d = lab - prd
    acc_ref[...] += w * d * d                               # pure VPU per step

    @pl.when(pid == pl.num_programs(0) - 1)
    def _():
        out_ref[0] = jnp.sum(acc_ref[...])                  # single reduce, once


def yolo_loss(label, predict, *, tile_n=TILE_N):
    """label: (batch, S, S, 25), predict: (batch, S, S, 30) -> scalar f32."""
    lab = label.reshape(-1, 25)
    prd = predict.reshape(-1, 30)
    n = lab.shape[0]

    # Align label to the 30-channel predict layout:
    #   [classes 0:20, conf 20, box 21:25, conf 25, box 26:30]
    lab30 = jnp.concatenate([lab, lab[:, 20:21], lab[:, 21:25]], axis=-1)

    # Pad rows to a multiple of tile_n with zeros (conf=0 -> noobj, d=0 -> no
    # contribution), so no tile reduces over garbage.
    n_pad = pl.cdiv(n, tile_n) * tile_n
    pad = n_pad - n
    if pad:
        lab30 = jnp.pad(lab30, ((0, pad), (0, 0)))
        prd = jnp.pad(prd, ((0, pad), (0, 0)))

    grid = (n_pad // tile_n,)

    out = pl.pallas_call(
        _yolo_loss_kernel,
        out_shape=jax.ShapeDtypeStruct((1,), jnp.float32),
        grid_spec=pltpu.PrefetchScalarGridSpec(
            num_scalar_prefetch=0,
            grid=grid,
            in_specs=[
                pl.BlockSpec((tile_n, 30), lambda i: (i, 0)),
                pl.BlockSpec((tile_n, 30), lambda i: (i, 0)),
            ],
            out_specs=pl.BlockSpec(memory_space=pltpu.SMEM),
            scratch_shapes=[pltpu.VMEM((tile_n, 30), jnp.float32)],
        ),
        compiler_params=pltpu.CompilerParams(
            # Reduction into a shared accumulator -> must stay sequential.
            dimension_semantics=("arbitrary",),
            # Per-step footprint is ~0.3 MiB (2 inputs x 2 buffers x 512x30xf32
            # + accumulator); 32 MiB leaves ample headroom on every generation.
            vmem_limit_bytes=32 * 1024 * 1024,
        ),
    )(lab30, prd)
    return out[0]


def yolo_loss_ref(label, predict):
    """Pure-JAX reference mirroring the PyTorch forward exactly."""
    label = label.reshape(-1, 25).astype(jnp.float32)
    predict = predict.reshape(-1, 30).astype(jnp.float32)
    obj = (label[:, 20] >= 0.9).astype(jnp.float32)
    noobj = 1.0 - obj

    def sse(a, b, m):
        d = a - b
        return jnp.sum(m * d * d)

    obj_c = obj[:, None]
    loc = (
        sse(label[:, 21:23], predict[:, 21:23], obj_c)
        + sse(label[:, 21:23], predict[:, 26:28], obj_c)
        + sse(label[:, 23:25], predict[:, 23:25], obj_c)
        + sse(label[:, 23:25], predict[:, 28:30], obj_c)
    )
    objl = sse(label[:, 20], predict[:, 20], obj) + sse(label[:, 20], predict[:, 25], obj)
    noobjl = sse(label[:, 20], predict[:, 20], noobj) + sse(label[:, 20], predict[:, 25], noobj)
    cls = sse(label[:, :20], predict[:, :20], obj_c)
    return L_COORD * loc + objl + L_NOOBJ * noobjl + cls


def _make_inputs(batch, key):
    k1, k2, k3, k4 = jax.random.split(key, 4)
    cls = jax.random.uniform(k1, (batch, S, S, 20), dtype=jnp.float32)
    conf = (jax.random.uniform(k2, (batch, S, S, 1), dtype=jnp.float32) > 0.7).astype(jnp.float32)
    box = jax.random.uniform(k3, (batch, S, S, 4), dtype=jnp.float32)
    label = jnp.concatenate([cls, conf, box], axis=-1)                  # (batch, 7, 7, 25)
    predict = jax.random.normal(k4, (batch, S, S, 30), dtype=jnp.float32)
    return label, predict


if __name__ == "__main__":
    key = jax.random.PRNGKey(0)
    k_small, k_big = jax.random.split(key)

    # Small case (single grid step).
    label, predict = _make_inputs(2, k_small)
    loss = yolo_loss(label, predict)
    jax.block_until_ready(loss)
    ref = yolo_loss_ref(label, predict)
    assert jnp.allclose(loss, ref, rtol=1e-5, atol=1e-3), (loss, ref)

    # Larger case exercising the multi-step accumulator path (grid > 1).
    label_b, predict_b = _make_inputs(16, k_big)
    loss_b = yolo_loss(label_b, predict_b)
    jax.block_until_ready(loss_b)
    ref_b = yolo_loss_ref(label_b, predict_b)
    assert jnp.allclose(loss_b, ref_b, rtol=1e-5, atol=1e-2), (loss_b, ref_b)

    print("KERNEL_OK")
</pallas_src>

<mosaic_0001>
module attributes {stable_mosaic.version = 11 : i64} {
  func.func @_yolo_loss_kernel(%arg0: i32, %arg1: memref<512x30xf32, #tpu.memory_space<vmem>>, %arg2: memref<512x30xf32, #tpu.memory_space<vmem>>, %arg3: memref<1xf32, #tpu.memory_space<smem>>, %arg4: memref<512x30xf32, #tpu.memory_space<vmem>>) attributes {dimension_semantics = [#tpu.dimension_semantics<arbitrary>], iteration_bounds = array<i64: 1>, scalar_prefetch = 0 : i64, scratch_operands = 1 : i64, tpu.core_type = #tpu.core_type<tc>, window_params = [{transform_indices = @transform_0, window_bounds = array<i64: 512, 30>}, {transform_indices = @transform_1, window_bounds = array<i64: 512, 30>}, {transform_indices = @transform_2, window_bounds = array<i64: 1>}]} {
    %c0_i32 = arith.constant 0 : i32
    %0 = arith.cmpi eq, %arg0, %c0_i32 : i32
    %1 = arith.extui %0 : i1 to i32
    %c0_i32_0 = arith.constant 0 : i32
    %2 = arith.cmpi ne, %1, %c0_i32_0 : i32
    scf.if %2 {
      %cst_16 = arith.constant 0.000000e+00 : f32
      %44 = vector.broadcast %cst_16 : f32 to vector<512x30xf32>
      %c0_17 = arith.constant 0 : index
      %c0_18 = arith.constant 0 : index
      %45 = vector.load %arg4[%c0_17, %c0_18] : memref<512x30xf32, #tpu.memory_space<vmem>>, vector<512x30xf32>
      tpu.vector_store %arg4[%c0_17, %c0_18], %44 {strides = array<i32>} : memref<512x30xf32, #tpu.memory_space<vmem>>, vector<512x30xf32>,
    } else {
    }
    %c0 = arith.constant 0 : index
    %c0_1 = arith.constant 0 : index
    %3 = vector.load %arg1[%c0, %c0_1] : memref<512x30xf32, #tpu.memory_space<vmem>>, vector<512x30xf32>
    %c0_2 = arith.constant 0 : index
    %c0_3 = arith.constant 0 : index
    %4 = vector.load %arg2[%c0_2, %c0_3] : memref<512x30xf32, #tpu.memory_space<vmem>>, vector<512x30xf32>
    %5 = tpu.iota {dimensions = array<i32: 1>} : vector<1x30xi32>
    %c20_i32 = arith.constant 20 : i32
    %6 = vector.broadcast %c20_i32 : i32 to vector<1x30xi32>
    %7 = arith.cmpi eq, %5, %6 : vector<1x30xi32>
    %c25_i32 = arith.constant 25 : i32
    %8 = vector.broadcast %c25_i32 : i32 to vector<1x30xi32>
    %9 = arith.cmpi eq, %5, %8 : vector<1x30xi32>
    %10 = arith.ori %7, %9 : vector<1x30xi1>
    %c21_i32 = arith.constant 21 : i32
    %11 = vector.broadcast %c21_i32 : i32 to vector<1x30xi32>
    %12 = arith.cmpi sge, %5, %11 : vector<1x30xi32>
    %cst = arith.constant dense<true> : vector<1x30xi1>
    %13 = arith.xori %10, %cst : vector<1x30xi1>
    %14 = arith.andi %12, %13 : vector<1x30xi1>
    %cst_4 = arith.constant 5.000000e+00 : f32
    %cst_5 = arith.constant 1.000000e+00 : f32
    %15 = vector.broadcast %cst_4 : f32 to vector<1x30xf32>
    %16 = vector.broadcast %cst_5 : f32 to vector<1x30xf32>
    %17 = arith.select %14, %15, %16 : vector<1x30xi1>, vector<1x30xf32>
    %cst_6 = arith.constant 5.000000e-01 : f32
    %cst_7 = arith.constant 0.000000e+00 : f32
    %18 = vector.broadcast %cst_6 : f32 to vector<1x30xf32>
    %19 = vector.broadcast %cst_7 : f32 to vector<1x30xf32>
    %20 = arith.select %10, %18, %19 : vector<1x30xi1>, vector<1x30xf32>
    %21 = vector.extract_strided_slice %3 {offsets = [0, 20], sizes = [512, 1], strides = [1, 1]} : vector<512x30xf32> to vector<512x1xf32>
    %cst_8 = arith.constant 0.899999976 : f32
    %22 = vector.broadcast %cst_8 : f32 to vector<512x1xf32>
    %23 = arith.cmpf oge, %21, %22 : vector<512x1xf32>
    %24 = arith.extui %23 : vector<512x1xi1> to vector<512x1xi32>
    %25 = arith.sitofp %24 : vector<512x1xi32> to vector<512x1xf32>
    %26 = vector.broadcast %25 : vector<512x1xf32> to vector<512x30xf32>
    %27 = vector.broadcast %17 : vector<1x30xf32> to vector<512x30xf32>
    %28 = arith.mulf %26, %27 : vector<512x30xf32>
    %cst_9 = arith.constant 1.000000e+00 : f32
    %29 = vector.broadcast %cst_9 : f32 to vector<512x1xf32>
    %30 = arith.subf %29, %25 : vector<512x1xf32>
    %31 = vector.broadcast %30 : vector<512x1xf32> to vector<512x30xf32>
    %32 = vector.broadcast %20 : vector<1x30xf32> to vector<512x30xf32>
    %33 = arith.mulf %31, %32 : vector<512x30xf32>
    %34 = arith.addf %28, %33 : vector<512x30xf32>
    %35 = arith.subf %3, %4 : vector<512x30xf32>
    %c0_10 = arith.constant 0 : index
    %c0_11 = arith.constant 0 : index
    %36 = vector.load %arg4[%c0_10, %c0_11] : memref<512x30xf32, #tpu.memory_space<vmem>>, vector<512x30xf32>
    %37 = arith.mulf %34, %35 : vector<512x30xf32>
    %38 = arith.mulf %37, %35 : vector<512x30xf32>
    %39 = arith.addf %36, %38 : vector<512x30xf32>
    %c0_12 = arith.constant 0 : index
    %c0_13 = arith.constant 0 : index
    %40 = vector.load %arg4[%c0_12, %c0_13] : memref<512x30xf32, #tpu.memory_space<vmem>>, vector<512x30xf32>
    tpu.vector_store %arg4[%c0_12, %c0_13], %39 {strides = array<i32>} : memref<512x30xf32, #tpu.memory_space<vmem>>, vector<512x30xf32>,
    %c0_i32_14 = arith.constant 0 : i32
    %41 = arith.cmpi eq, %arg0, %c0_i32_14 : i32
    %42 = arith.extui %41 : i1 to i32
    %c0_i32_15 = arith.constant 0 : i32
    %43 = arith.cmpi ne, %42, %c0_i32_15 : i32
    scf.if %43 {
      %c0_16 = arith.constant 0 : index
      %c0_17 = arith.constant 0 : index
      %44 = vector.load %arg4[%c0_16, %c0_17] : memref<512x30xf32, #tpu.memory_space<vmem>>, vector<512x30xf32>
      %45 = vector.shape_cast %44 : vector<512x30xf32> to vector<1x512x30xf32>
      %cst_18 = arith.constant dense<0.000000e+00> : vector<1xf32>
      %46 = vector.multi_reduction <add>, %45, %cst_18 [1, 2] : vector<1x512x30xf32> to vector<1xf32>
      %47 = vector.shape_cast %46 : vector<1xf32> to vector<1x1x1xf32>
      %48 = vector.extract %47[0, 0, 0] : f32 from vector<1x1x1xf32>
      %c0_19 = arith.constant 0 : index
      %49 = memref.load %arg3[%c0_19] : memref<1xf32, #tpu.memory_space<smem>>
      memref.store %48, %arg3[%c0_19] : memref<1xf32, #tpu.memory_space<smem>>
    } else {
    }
    return
  }
  func.func @transform_0(%arg0: i32) -> (i32, i32) {
    %c0_i32 = arith.constant 0 : i32
    %c0_i32_0 = arith.constant 0 : i32
    return %arg0, %c0_i32 : i32, i32
  }
  func.func @transform_1(%arg0: i32) -> (i32, i32) {
    %c0_i32 = arith.constant 0 : i32
    %c0_i32_0 = arith.constant 0 : i32
    return %arg0, %c0_i32 : i32, i32
  }
  func.func @transform_2(%arg0: i32) -> i32 {
    %c0_i32 = arith.constant 0 : i32
    %c0_i32_0 = arith.constant 0 : i32
    return %c0_i32 : i32
  }
}

</mosaic_0001>

<llo_original>
// kernel: tpu_custom_call.1
$region0: #{tpu_custom_call.1}
  #allocation0 [shape = 'u32[]', space=smem, size = 0x4, offset = 0x4, fixed_abs, tag = 'smem constant byte address 0x4 - core index']
  #allocation1 [shape = 'u32[144,128]{1,0:T(1,128)}', space=vmem, size = 0x12000, scoped, tag = 'internal scratch']
  #allocation2 [shape = 'f32[512,30]{1,0:T(8,128)}', space=vmem, size = 0x40000, scoped, tag = 'scratch operand']
  %s0 = inlined_call_operand.vmem [shape: f32[512,30], index: 0, kind: input, shape index: {}]
  %s1 = inlined_call_operand.vmem [shape: f32[512,30], index: 1, kind: input, shape index: {}]
  %s2 = inlined_call_operand.hbm [shape: f32[1], index: 2, kind: output, shape index: {}]
  %s3 = sld [smem:[#allocation0]]
  $region26: #{tpu_custom_call.1} parent=0
    _
  %s5 = ssub.s32 1, %s3
  %s6 = scalar_select 0, %s5, %s3
  $region1: #{tpu_custom_call.1} parent=0
    #allocation3 [shape = 'u8[512]{0}', space=smem, size = 0x200, scoped, tag = 'output window, operand 0, single buffered']
    #allocation4 [shape = 's32[1]{0}', space=sflag, size = 0x4, scoped, tag = 'scoped memory for tpu_custom_call.1']
    %7 = vsyncpa [#allocation4], 0
    // Predicated region
    $region2: #{tpu_custom_call.1} parent=1 // pred_check
      _
    $region3: #{tpu_custom_call.1} parent=1 // pred_check_branch
      %9 = sbr.rel (0) target = $region5
    $region4: #{tpu_custom_call.1} parent=1 // pred_region
      _
    $region5: #{tpu_custom_call.1} parent=1 // pred_fallthru
      _
    // Predicated region
    $region6: #{tpu_custom_call.1} parent=1 // pred_check
      _
    $region7: #{tpu_custom_call.1} parent=1 // pred_check_branch
      %11 = sbr.rel (0) target = $region9
    $region8: #{tpu_custom_call.1} parent=1 // pred_region
      _
    $region9: #{tpu_custom_call.1} parent=1 // pred_fallthru
      _
    %p12 = scmp.eq.s32.totalorder 0, 0
    // Predicated region
    $region10: #{tpu_custom_call.1} parent=1 // pred_check
      %p13 = pneg %p12
    $region11: #{tpu_custom_call.1} parent=1 // pred_check_branch
      %15 = sbr.rel (%p13) target = $region13
    $region12: #{tpu_custom_call.1} parent=1 // pred_region
      %vm16 = vcmask 244736
      %17 = vst.msk [vmem:[#allocation2] sm:$0xff] %vm16, 0.0
      %18 = vst.msk [vmem:[#allocation2 + $0x8] sm:$0xff] %vm16, 0.0
      %19 = vst.msk [vmem:[#allocation2 + $0x10] sm:$0xff] %vm16, 0.0
      %20 = vst.msk [vmem:[#allocation2 + $0x18] sm:$0xff] %vm16, 0.0
      %21 = vst.msk [vmem:[#allocation2 + $0x20] sm:$0xff] %vm16, 0.0
      %22 = vst.msk [vmem:[#allocation2 + $0x28] sm:$0xff] %vm16, 0.0
      %23 = vst.msk [vmem:[#allocation2 + $0x30] sm:$0xff] %vm16, 0.0
      %24 = vst.msk [vmem:[#allocation2 + $0x38] sm:$0xff] %vm16, 0.0
      %25 = vst.msk [vmem:[#allocation2 + $0x40] sm:$0xff] %vm16, 0.0
      %26 = vst.msk [vmem:[#allocation2 + $0x48] sm:$0xff] %vm16, 0.0
      %27 = vst.msk [vmem:[#allocation2 + $0x50] sm:$0xff] %vm16, 0.0
      %28 = vst.msk [vmem:[#allocation2 + $0x58] sm:$0xff] %vm16, 0.0
      %29 = vst.msk [vmem:[#allocation2 + $0x60] sm:$0xff] %vm16, 0.0
      %30 = vst.msk [vmem:[#allocation2 + $0x68] sm:$0xff] %vm16, 0.0
      %31 = vst.msk [vmem:[#allocation2 + $0x70] sm:$0xff] %vm16, 0.0
      %32 = vst.msk [vmem:[#allocation2 + $0x78] sm:$0xff] %vm16, 0.0
      %33 = vst.msk [vmem:[#allocation2 + $0x80] sm:$0xff] %vm16, 0.0
      %34 = vst.msk [vmem:[#allocation2 + $0x88] sm:$0xff] %vm16, 0.0
      %35 = vst.msk [vmem:[#allocation2 + $0x90] sm:$0xff] %vm16, 0.0
      %36 = vst.msk [vmem:[#allocation2 + $0x98] sm:$0xff] %vm16, 0.0
      %37 = vst.msk [vmem:[#allocation2 + $0xa0] sm:$0xff] %vm16, 0.0
      %38 = vst.msk [vmem:[#allocation2 + $0xa8] sm:$0xff] %vm16, 0.0
      %39 = vst.msk [vmem:[#allocation2 + $0xb0] sm:$0xff] %vm16, 0.0
      %40 = vst.msk [vmem:[#allocation2 + $0xb8] sm:$0xff] %vm16, 0.0
      %41 = vst.msk [vmem:[#allocation2 + $0xc0] sm:$0xff] %vm16, 0.0
      %42 = vst.msk [vmem:[#allocation2 + $0xc8] sm:$0xff] %vm16, 0.0
      %43 = vst.msk [vmem:[#allocation2 + $0xd0] sm:$0xff] %vm16, 0.0
      %44 = vst.msk [vmem:[#allocation2 + $0xd8] sm:$0xff] %vm16, 0.0
      %45 = vst.msk [vmem:[#allocation2 + $0xe0] sm:$0xff] %vm16, 0.0
      %46 = vst.msk [vmem:[#allocation2 + $0xe8] sm:$0xff] %vm16, 0.0
      %47 = vst.msk [vmem:[#allocation2 + $0xf0] sm:$0xff] %vm16, 0.0
      %48 = vst.msk [vmem:[#allocation2 + $0xf8] sm:$0xff] %vm16, 0.0
      %49 = vst.msk [vmem:[#allocation2 + $0x100] sm:$0xff] %vm16, 0.0
      %50 = vst.msk [vmem:[#allocation2 + $0x108] sm:$0xff] %vm16, 0.0
      %51 = vst.msk [vmem:[#allocation2 + $0x110] sm:$0xff] %vm16, 0.0
      %52 = vst.msk [vmem:[#allocation2 + $0x118] sm:$0xff] %vm16, 0.0
      %53 = vst.msk [vmem:[#allocation2 + $0x120] sm:$0xff] %vm16, 0.0
      %54 = vst.msk [vmem:[#allocation2 + $0x128] sm:$0xff] %vm16, 0.0
      %55 = vst.msk [vmem:[#allocation2 + $0x130] sm:$0xff] %vm16, 0.0
      %56 = vst.msk [vmem:[#allocation2 + $0x138] sm:$0xff] %vm16, 0.0
      %57 = vst.msk [vmem:[#allocation2 + $0x140] sm:$0xff] %vm16, 0.0
      %58 = vst.msk [vmem:[#allocation2 + $0x148] sm:$0xff] %vm16, 0.0
      %59 = vst.msk [vmem:[#allocation2 + $0x150] sm:$0xff] %vm16, 0.0
      %60 = vst.msk [vmem:[#allocation2 + $0x158] sm:$0xff] %vm16, 0.0
      %61 = vst.msk [vmem:[#allocation2 + $0x160] sm:$0xff] %vm16, 0.0
      %62 = vst.msk [vmem:[#allocation2 + $0x168] sm:$0xff] %vm16, 0.0
      %63 = vst.msk [vmem:[#allocation2 + $0x170] sm:$0xff] %vm16, 0.0
      %64 = vst.msk [vmem:[#allocation2 + $0x178] sm:$0xff] %vm16, 0.0
      %65 = vst.msk [vmem:[#allocation2 + $0x180] sm:$0xff] %vm16, 0.0
      %66 = vst.msk [vmem:[#allocation2 + $0x188] sm:$0xff] %vm16, 0.0
      %67 = vst.msk [vmem:[#allocation2 + $0x190] sm:$0xff] %vm16, 0.0
      %68 = vst.msk [vmem:[#allocation2 + $0x198] sm:$0xff] %vm16, 0.0
      %69 = vst.msk [vmem:[#allocation2 + $0x1a0] sm:$0xff] %vm16, 0.0
      %70 = vst.msk [vmem:[#allocation2 + $0x1a8] sm:$0xff] %vm16, 0.0
      %71 = vst.msk [vmem:[#allocation2 + $0x1b0] sm:$0xff] %vm16, 0.0
      %72 = vst.msk [vmem:[#allocation2 + $0x1b8] sm:$0xff] %vm16, 0.0
      %73 = vst.msk [vmem:[#allocation2 + $0x1c0] sm:$0xff] %vm16, 0.0
      %74 = vst.msk [vmem:[#allocation2 + $0x1c8] sm:$0xff] %vm16, 0.0
      %75 = vst.msk [vmem:[#allocation2 + $0x1d0] sm:$0xff] %vm16, 0.0
      %76 = vst.msk [vmem:[#allocation2 + $0x1d8] sm:$0xff] %vm16, 0.0
      %77 = vst.msk [vmem:[#allocation2 + $0x1e0] sm:$0xff] %vm16, 0.0
      %78 = vst.msk [vmem:[#allocation2 + $0x1e8] sm:$0xff] %vm16, 0.0
      %79 = vst.msk [vmem:[#allocation2 + $0x1f0] sm:$0xff] %vm16, 0.0
      %80 = vst.msk [vmem:[#allocation2 + $0x1f8] sm:$0xff] %vm16, 0.0
    $region13: #{tpu_custom_call.1} parent=1 // pred_fallthru
      _
    %v81 = vld [vmem:[%s0] sm:$0xff]
    %v82 = vld [vmem:[%s0 + $0x8] sm:$0xff]
    %v83 = vld [vmem:[%s0 + $0x10] sm:$0xff]
    %v84 = vld [vmem:[%s0 + $0x18] sm:$0xff]
    %v85 = vld [vmem:[%s0 + $0x20] sm:$0xff]
    %v86 = vld [vmem:[%s0 + $0x28] sm:$0xff]
    %v87 = vld [vmem:[%s0 + $0x30] sm:$0xff]
    %v88 = vld [vmem:[%s0 + $0x38] sm:$0xff]
    %v89 = vld [vmem:[%s0 + $0x40] sm:$0xff]
    %v90 = vld [vmem:[%s0 + $0x48] sm:$0xff]
    %v91 = vld [vmem:[%s0 + $0x50] sm:$0xff]
    %v92 = vld [vmem:[%s0 + $0x58] sm:$0xff]
    %v93 = vld [vmem:[%s0 + $0x60] sm:$0xff]
    %v94 = vld [vmem:[%s0 + $0x68] sm:$0xff]
    %v95 = vld [vmem:[%s0 + $0x70] sm:$0xff]
    %v96 = vld [vmem:[%s0 + $0x78] sm:$0xff]
    %v97 = vld [vmem:[%s0 + $0x80] sm:$0xff]
    %v98 = vld [vmem:[%s0 + $0x88] sm:$0xff]
    %v99 = vld [vmem:[%s0 + $0x90] sm:$0xff]
    %v100 = vld [vmem:[%s0 + $0x98] sm:$0xff]
    %v101 = vld [vmem:[%s0 + $0xa0] sm:$0xff]
    %v102 = vld [vmem:[%s0 + $0xa8] sm:$0xff]
    %v103 = vld [vmem:[%s0 + $0xb0] sm:$0xff]
    %v104 = vld [vmem:[%s0 + $0xb8] sm:$0xff]
    %v105 = vld [vmem:[%s0 + $0xc0] sm:$0xff]
    %v106 = vld [vmem:[%s0 + $0xc8] sm:$0xff]
    %v107 = vld [vmem:[%s0 + $0xd0] sm:$0xff]
    %v108 = vld [vmem:[%s0 + $0xd8] sm:$0xff]
    %v109 = vld [vmem:[%s0 + $0xe0] sm:$0xff]
    %v110 = vld [vmem:[%s0 + $0xe8] sm:$0xff]
    %v111 = vld [vmem:[%s0 + $0xf0] sm:$0xff]
    %v112 = vld [vmem:[%s0 + $0xf8] sm:$0xff]
    %v113 = vld [vmem:[%s0 + $0x100] sm:$0xff]
    %v114 = vld [vmem:[%s0 + $0x108] sm:$0xff]
    %v115 = vld [vmem:[%s0 + $0x110] sm:$0xff]
    %v116 = vld [vmem:[%s0 + $0x118] sm:$0xff]
    %v117 = vld [vmem:[%s0 + $0x120] sm:$0xff]
    %v118 = vld [vmem:[%s0 + $0x128] sm:$0xff]
    %v119 = vld [vmem:[%s0 + $0x130] sm:$0xff]
    %v120 = vld [vmem:[%s0 + $0x138] sm:$0xff]
    %v121 = vld [vmem:[%s0 + $0x140] sm:$0xff]
    %v122 = vld [vmem:[%s0 + $0x148] sm:$0xff]
    %v123 = vld [vmem:[%s0 + $0x150] sm:$0xff]
    %v124 = vld [vmem:[%s0 + $0x158] sm:$0xff]
    %v125 = vld [vmem:[%s0 + $0x160] sm:$0xff]
    %v126 = vld [vmem:[%s0 + $0x168] sm:$0xff]
    %v127 = vld [vmem:[%s0 + $0x170] sm:$0xff]
    %v128 = vld [vmem:[%s0 + $0x178] sm:$0xff]
    %v129 = vld [vmem:[%s0 + $0x180] sm:$0xff]
    %v130 = vld [vmem:[%s0 + $0x188] sm:$0xff]
    %v131 = vld [vmem:[%s0 + $0x190] sm:$0xff]
    %v132 = vld [vmem:[%s0 + $0x198] sm:$0xff]
    %v133 = vld [vmem:[%s0 + $0x1a0] sm:$0xff]
    %v134 = vld [vmem:[%s0 + $0x1a8] sm:$0xff]
    %v135 = vld [vmem:[%s0 + $0x1b0] sm:$0xff]
    %v136 = vld [vmem:[%s0 + $0x1b8] sm:$0xff]
    %v137 = vld [vmem:[%s0 + $0x1c0] sm:$0xff]
    %v138 = vld [vmem:[%s0 + $0x1c8] sm:$0xff]
    %v139 = vld [vmem:[%s0 + $0x1d0] sm:$0xff]
    %v140 = vld [vmem:[%s0 + $0x1d8] sm:$0xff]
    %v141 = vld [vmem:[%s0 + $0x1e0] sm:$0xff]
    %v142 = vld [vmem:[%s0 + $0x1e8] sm:$0xff]
    %v143 = vld [vmem:[%s0 + $0x1f0] sm:$0xff]
    %v144 = vld [vmem:[%s0 + $0x1f8] sm:$0xff]
    %v145 = vld [vmem:[%s1] sm:$0xff]
    %v146 = vld [vmem:[%s1 + $0x8] sm:$0xff]
    %v147 = vld [vmem:[%s1 + $0x10] sm:$0xff]
    %v148 = vld [vmem:[%s1 + $0x18] sm:$0xff]
    %v149 = vld [vmem:[%s1 + $0x20] sm:$0xff]
    %v150 = vld [vmem:[%s1 + $0x28] sm:$0xff]
    %v151 = vld [vmem:[%s1 + $0x30] sm:$0xff]
    %v152 = vld [vmem:[%s1 + $0x38] sm:$0xff]
    %v153 = vld [vmem:[%s1 + $0x40] sm:$0xff]
    %v154 = vld [vmem:[%s1 + $0x48] sm:$0xff]
    %v155 = vld [vmem:[%s1 + $0x50] sm:$0xff]
    %v156 = vld [vmem:[%s1 + $0x58] sm:$0xff]
    %v157 = vld [vmem:[%s1 + $0x60] sm:$0xff]
    %v158 = vld [vmem:[%s1 + $0x68] sm:$0xff]
    %v159 = vld [vmem:[%s1 + $0x70] sm:$0xff]
    %v160 = vld [vmem:[%s1 + $0x78] sm:$0xff]
    %v161 = vld [vmem:[%s1 + $0x80] sm:$0xff]
    %v162 = vld [vmem:[%s1 + $0x88] sm:$0xff]
    %v163 = vld [vmem:[%s1 + $0x90] sm:$0xff]
    %v164 = vld [vmem:[%s1 + $0x98] sm:$0xff]
    %v165 = vld [vmem:[%s1 + $0xa0] sm:$0xff]
    %v166 = vld [vmem:[%s1 + $0xa8] sm:$0xff]
    %v167 = vld [vmem:[%s1 + $0xb0] sm:$0xff]
    %v168 = vld [vmem:[%s1 + $0xb8] sm:$0xff]
    %v169 = vld [vmem:[%s1 + $0xc0] sm:$0xff]
    %v170 = vld [vmem:[%s1 + $0xc8] sm:$0xff]
    %v171 = vld [vmem:[%s1 + $0xd0] sm:$0xff]
    %v172 = vld [vmem:[%s1 + $0xd8] sm:$0xff]
    %v173 = vld [vmem:[%s1 + $0xe0] sm:$0xff]
    %v174 = vld [vmem:[%s1 + $0xe8] sm:$0xff]
    %v175 = vld [vmem:[%s1 + $0xf0] sm:$0xff]
    %v176 = vld [vmem:[%s1 + $0xf8] sm:$0xff]
    %v177 = vld [vmem:[%s1 + $0x100] sm:$0xff]
    %v178 = vld [vmem:[%s1 + $0x108] sm:$0xff]
    %v179 = vld [vmem:[%s1 + $0x110] sm:$0xff]
    %v180 = vld [vmem:[%s1 + $0x118] sm:$0xff]
    %v181 = vld [vmem:[%s1 + $0x120] sm:$0xff]
    %v182 = vld [vmem:[%s1 + $0x128] sm:$0xff]
    %v183 = vld [vmem:[%s1 + $0x130] sm:$0xff]
    %v184 = vld [vmem:[%s1 + $0x138] sm:$0xff]
    %v185 = vld [vmem:[%s1 + $0x140] sm:$0xff]
    %v186 = vld [vmem:[%s1 + $0x148] sm:$0xff]
    %v187 = vld [vmem:[%s1 + $0x150] sm:$0xff]
    %v188 = vld [vmem:[%s1 + $0x158] sm:$0xff]
    %v189 = vld [vmem:[%s1 + $0x160] sm:$0xff]
    %v190 = vld [vmem:[%s1 + $0x168] sm:$0xff]
    %v191 = vld [vmem:[%s1 + $0x170] sm:$0xff]
    %v192 = vld [vmem:[%s1 + $0x178] sm:$0xff]
    %v193 = vld [vmem:[%s1 + $0x180] sm:$0xff]
    %v194 = vld [vmem:[%s1 + $0x188] sm:$0xff]
    %v195 = vld [vmem:[%s1 + $0x190] sm:$0xff]
    %v196 = vld [vmem:[%s1 + $0x198] sm:$0xff]
    %v197 = vld [vmem:[%s1 + $0x1a0] sm:$0xff]
    %v198 = vld [vmem:[%s1 + $0x1a8] sm:$0xff]
    %v199 = vld [vmem:[%s1 + $0x1b0] sm:$0xff]
    %v200 = vld [vmem:[%s1 + $0x1b8] sm:$0xff]
    %v201 = vld [vmem:[%s1 + $0x1c0] sm:$0xff]
    %v202 = vld [vmem:[%s1 + $0x1c8] sm:$0xff]
    %v203 = vld [vmem:[%s1 + $0x1d0] sm:$0xff]
    %v204 = vld [vmem:[%s1 + $0x1d8] sm:$0xff]
    %v205 = vld [vmem:[%s1 + $0x1e0] sm:$0xff]
    %v206 = vld [vmem:[%s1 + $0x1e8] sm:$0xff]
    %v207 = vld [vmem:[%s1 + $0x1f0] sm:$0xff]
    %v208 = vld [vmem:[%s1 + $0x1f8] sm:$0xff]
    %v209 = vlaneseq
    %v210 = vand.u32 %v209, 127
    %vm211 = vcmp.eq.s32.totalorder %v210, 20
    %vm212 = vcmp.eq.s32.totalorder %v210, 25
    %vm213 = vmor %vm211, %vm212
    %vm214 = vcmp.ge.s32.totalorder %v210, 21
    %vm215 = vmxor %vm213, 1
    %vm216 = vmand %vm214, %vm215
    %v217 = vsel %vm216, 5.0, 1.0
    %v218 = vsel %vm213, 0.5, 0.0
    %vm219 = vcmp.ge.f32.partialorder %v81, 0.9
    %vm220 = vcmp.ge.f32.partialorder %v82, 0.9
    %vm221 = vcmp.ge.f32.partialorder %v83, 0.9
    %vm222 = vcmp.ge.f32.partialorder %v84, 0.9
    %vm223 = vcmp.ge.f32.partialorder %v85, 0.9
    %vm224 = vcmp.ge.f32.partialorder %v86, 0.9
    %vm225 = vcmp.ge.f32.partialorder %v87, 0.9
    %vm226 = vcmp.ge.f32.partialorder %v88, 0.9
    %vm227 = vcmp.ge.f32.partialorder %v89, 0.9
    %vm228 = vcmp.ge.f32.partialorder %v90, 0.9
    %vm229 = vcmp.ge.f32.partialorder %v91, 0.9
    %vm230 = vcmp.ge.f32.partialorder %v92, 0.9
    %vm231 = vcmp.ge.f32.partialorder %v93, 0.9
    %vm232 = vcmp.ge.f32.partialorder %v94, 0.9
    %vm233 = vcmp.ge.f32.partialorder %v95, 0.9
    %vm234 = vcmp.ge.f32.partialorder %v96, 0.9
    %vm235 = vcmp.ge.f32.partialorder %v97, 0.9
    %vm236 = vcmp.ge.f32.partialorder %v98, 0.9
    %vm237 = vcmp.ge.f32.partialorder %v99, 0.9
    %vm238 = vcmp.ge.f32.partialorder %v100, 0.9
    %vm239 = vcmp.ge.f32.partialorder %v101, 0.9
    %vm240 = vcmp.ge.f32.partialorder %v102, 0.9
    %vm241 = vcmp.ge.f32.partialorder %v103, 0.9
    %vm242 = vcmp.ge.f32.partialorder %v104, 0.9
    %vm243 = vcmp.ge.f32.partialorder %v105, 0.9
    %vm244 = vcmp.ge.f32.partialorder %v106, 0.9
    %vm245 = vcmp.ge.f32.partialorder %v107, 0.9
    %vm246 = vcmp.ge.f32.partialorder %v108, 0.9
    %vm247 = vcmp.ge.f32.partialorder %v109, 0.9
    %vm248 = vcmp.ge.f32.partialorder %v110, 0.9
    %vm249 = vcmp.ge.f32.partialorder %v111, 0.9
    %vm250 = vcmp.ge.f32.partialorder %v112, 0.9
    %vm251 = vcmp.ge.f32.partialorder %v113, 0.9
    %vm252 = vcmp.ge.f32.partialorder %v114, 0.9
    %vm253 = vcmp.ge.f32.partialorder %v115, 0.9
    %vm254 = vcmp.ge.f32.partialorder %v116, 0.9
    %vm255 = vcmp.ge.f32.partialorder %v117, 0.9
    %vm256 = vcmp.ge.f32.partialorder %v118, 0.9
    %vm257 = vcmp.ge.f32.partialorder %v119, 0.9
    %vm258 = vcmp.ge.f32.partialorder %v120, 0.9
    %vm259 = vcmp.ge.f32.partialorder %v121, 0.9
    %vm260 = vcmp.ge.f32.partialorder %v122, 0.9
    %vm261 = vcmp.ge.f32.partialorder %v123, 0.9
    %vm262 = vcmp.ge.f32.partialorder %v124, 0.9
    %vm263 = vcmp.ge.f32.partialorder %v125, 0.9
    %vm264 = vcmp.ge.f32.partialorder %v126, 0.9
    %vm265 = vcmp.ge.f32.partialorder %v127, 0.9
    %vm266 = vcmp.ge.f32.partialorder %v128, 0.9
    %vm267 = vcmp.ge.f32.partialorder %v129, 0.9
    %vm268 = vcmp.ge.f32.partialorder %v130, 0.9
    %vm269 = vcmp.ge.f32.partialorder %v131, 0.9
    %vm270 = vcmp.ge.f32.partialorder %v132, 0.9
    %vm271 = vcmp.ge.f32.partialorder %v133, 0.9
    %vm272 = vcmp.ge.f32.partialorder %v134, 0.9
    %vm273 = vcmp.ge.f32.partialorder %v135, 0.9
    %vm274 = vcmp.ge.f32.partialorder %v136, 0.9
    %vm275 = vcmp.ge.f32.partialorder %v137, 0.9
    %vm276 = vcmp.ge.f32.partialorder %v138, 0.9
    %vm277 = vcmp.ge.f32.partialorder %v139, 0.9
    %vm278 = vcmp.ge.f32.partialorder %v140, 0.9
    %vm279 = vcmp.ge.f32.partialorder %v141, 0.9
    %vm280 = vcmp.ge.f32.partialorder %v142, 0.9
    %vm281 = vcmp.ge.f32.partialorder %v143, 0.9
    %vm282 = vcmp.ge.f32.partialorder %v144, 0.9
    %v283 = vsel %vm219, 1, 0
    %v284 = vsel %vm220, 1, 0
    %v285 = vsel %vm221, 1, 0
    %v286 = vsel %vm222, 1, 0
    %v287 = vsel %vm223, 1, 0
    %v288 = vsel %vm224, 1, 0
    %v289 = vsel %vm225, 1, 0
    %v290 = vsel %vm226, 1, 0
    %v291 = vsel %vm227, 1, 0
    %v292 = vsel %vm228, 1, 0
    %v293 = vsel %vm229, 1, 0
    %v294 = vsel %vm230, 1, 0
    %v295 = vsel %vm231, 1, 0
    %v296 = vsel %vm232, 1, 0
    %v297 = vsel %vm233, 1, 0
    %v298 = vsel %vm234, 1, 0
    %v299 = vsel %vm235, 1, 0
    %v300 = vsel %vm236, 1, 0
    %v301 = vsel %vm237, 1, 0
    %v302 = vsel %vm238, 1, 0
    %v303 = vsel %vm239, 1, 0
    %v304 = vsel %vm240, 1, 0
    %v305 = vsel %vm241, 1, 0
    %v306 = vsel %vm242, 1, 0
    %v307 = vsel %vm243, 1, 0
    %v308 = vsel %vm244, 1, 0
    %v309 = vsel %vm245, 1, 0
    %v310 = vsel %vm246, 1, 0
    %v311 = vsel %vm247, 1, 0
    %v312 = vsel %vm248, 1, 0
    %v313 = vsel %vm249, 1, 0
    %v314 = vsel %vm250, 1, 0
    %v315 = vsel %vm251, 1, 0
    %v316 = vsel %vm252, 1, 0
    %v317 = vsel %vm253, 1, 0
    %v318 = vsel %vm254, 1, 0
    %v319 = vsel %vm255, 1, 0
    %v320 = vsel %vm256, 1, 0
    %v321 = vsel %vm257, 1, 0
    %v322 = vsel %vm258, 1, 0
    %v323 = vsel %vm259, 1, 0
    %v324 = vsel %vm260, 1, 0
    %v325 = vsel %vm261, 1, 0
    %v326 = vsel %vm262, 1, 0
    %v327 = vsel %vm263, 1, 0
    %v328 = vsel %vm264, 1, 0
    %v329 = vsel %vm265, 1, 0
    %v330 = vsel %vm266, 1, 0
    %v331 = vsel %vm267, 1, 0
    %v332 = vsel %vm268, 1, 0
    %v333 = vsel %vm269, 1, 0
    %v334 = vsel %vm270, 1, 0
    %v335 = vsel %vm271, 1, 0
    %v336 = vsel %vm272, 1, 0
    %v337 = vsel %vm273, 1, 0
    %v338 = vsel %vm274, 1, 0
    %v339 = vsel %vm275, 1, 0
    %v340 = vsel %vm276, 1, 0
    %v341 = vsel %vm277, 1, 0
    %v342 = vsel %vm278, 1, 0
    %v343 = vsel %vm279, 1, 0
    %v344 = vsel %vm280, 1, 0
    %v345 = vsel %vm281, 1, 0
    %v346 = vsel %vm282, 1, 0
    %v347 = vcvt.s32.f32 %v283
    %v348 = vcvt.s32.f32 %v284
    %v349 = vcvt.s32.f32 %v285
    %v350 = vcvt.s32.f32 %v286
    %v351 = vcvt.s32.f32 %v287
    %v352 = vcvt.s32.f32 %v288
    %v353 = vcvt.s32.f32 %v289
    %v354 = vcvt.s32.f32 %v290
    %v355 = vcvt.s32.f32 %v291
    %v356 = vcvt.s32.f32 %v292
    %v357 = vcvt.s32.f32 %v293
    %v358 = vcvt.s32.f32 %v294
    %v359 = vcvt.s32.f32 %v295
    %v360 = vcvt.s32.f32 %v296
    %v361 = vcvt.s32.f32 %v297
    %v362 = vcvt.s32.f32 %v298
    %v363 = vcvt.s32.f32 %v299
    %v364 = vcvt.s32.f32 %v300
    %v365 = vcvt.s32.f32 %v301
    %v366 = vcvt.s32.f32 %v302
    %v367 = vcvt.s32.f32 %v303
    %v368 = vcvt.s32.f32 %v304
    %v369 = vcvt.s32.f32 %v305
    %v370 = vcvt.s32.f32 %v306
    %v371 = vcvt.s32.f32 %v307
    %v372 = vcvt.s32.f32 %v308
    %v373 = vcvt.s32.f32 %v309
    %v374 = vcvt.s32.f32 %v310
    %v375 = vcvt.s32.f32 %v311
    %v376 = vcvt.s32.f32 %v312
    %v377 = vcvt.s32.f32 %v313
    %v378 = vcvt.s32.f32 %v314
    %v379 = vcvt.s32.f32 %v315
    %v380 = vcvt.s32.f32 %v316
    %v381 = vcvt.s32.f32 %v317
    %v382 = vcvt.s32.f32 %v318
    %v383 = vcvt.s32.f32 %v319
    %v384 = vcvt.s32.f32 %v320
    %v385 = vcvt.s32.f32 %v321
    %v386 = vcvt.s32.f32 %v322
    %v387 = vcvt.s32.f32 %v323
    %v388 = vcvt.s32.f32 %v324
    %v389 = vcvt.s32.f32 %v325
    %v390 = vcvt.s32.f32 %v326
    %v391 = vcvt.s32.f32 %v327
    %v392 = vcvt.s32.f32 %v328
    %v393 = vcvt.s32.f32 %v329
    %v394 = vcvt.s32.f32 %v330
    %v395 = vcvt.s32.f32 %v331
    %v396 = vcvt.s32.f32 %v332
    %v397 = vcvt.s32.f32 %v333
    %v398 = vcvt.s32.f32 %v334
    %v399 = vcvt.s32.f32 %v335
    %v400 = vcvt.s32.f32 %v336
    %v401 = vcvt.s32.f32 %v337
    %v402 = vcvt.s32.f32 %v338
    %v403 = vcvt.s32.f32 %v339
    %v404 = vcvt.s32.f32 %v340
    %v405 = vcvt.s32.f32 %v341
    %v406 = vcvt.s32.f32 %v342
    %v407 = vcvt.s32.f32 %v343
    %v408 = vcvt.s32.f32 %v344
    %v409 = vcvt.s32.f32 %v345
    %v410 = vcvt.s32.f32 %v346
    %412 = vset.pattern.permute.xlu0 20
    %413 = vperm.xlu0 %412, %v347
    %v414 = vpop.permute.xlu0 %413
    %417 = vset.pattern.permute.xlu0 20
    %418 = vperm.xlu0 %417, %v348
    %v419 = vpop.permute.xlu0 %418
    %422 = vset.pattern.permute.xlu0 20
    %423 = vperm.xlu0 %422, %v349
    %v424 = vpop.permute.xlu0 %423
    %427 = vset.pattern.permute.xlu0 20
    %428 = vperm.xlu0 %427, %v350
    %v429 = vpop.permute.xlu0 %428
    %432 = vset.pattern.permute.xlu0 20
    %433 = vperm.xlu0 %432, %v351
    %v434 = vpop.permute.xlu0 %433
    %437 = vset.pattern.permute.xlu0 20
    %438 = vperm.xlu0 %437, %v352
    %v439 = vpop.permute.xlu0 %438
    %442 = vset.pattern.permute.xlu0 20
    %443 = vperm.xlu0 %442, %v353
    %v444 = vpop.permute.xlu0 %443
    %447 = vset.pattern.permute.xlu0 20
    %448 = vperm.xlu0 %447, %v354
    %v449 = vpop.permute.xlu0 %448
    %452 = vset.pattern.permute.xlu0 20
    %453 = vperm.xlu0 %452, %v355
    %v454 = vpop.permute.xlu0 %453
    %457 = vset.pattern.permute.xlu0 20
    %458 = vperm.xlu0 %457, %v356
    %v459 = vpop.permute.xlu0 %458
    %462 = vset.pattern.permute.xlu0 20
    %463 = vperm.xlu0 %462, %v357
    %v464 = vpop.permute.xlu0 %463
    %467 = vset.pattern.permute.xlu0 20
    %468 = vperm.xlu0 %467, %v358
    %v469 = vpop.permute.xlu0 %468
    %472 = vset.pattern.permute.xlu0 20
    %473 = vperm.xlu0 %472, %v359
    %v474 = vpop.permute.xlu0 %473
    %477 = vset.pattern.permute.xlu0 20
    %478 = vperm.xlu0 %477, %v360
    %v479 = vpop.permute.xlu0 %478
    %482 = vset.pattern.permute.xlu0 20
    %483 = vperm.xlu0 %482, %v361
    %v484 = vpop.permute.xlu0 %483
    %487 = vset.pattern.permute.xlu0 20
    %488 = vperm.xlu0 %487, %v362
    %v489 = vpop.permute.xlu0 %488
    %492 = vset.pattern.permute.xlu0 20
    %493 = vperm.xlu0 %492, %v363
    %v494 = vpop.permute.xlu0 %493
    %497 = vset.pattern.permute.xlu0 20
    %498 = vperm.xlu0 %497, %v364
    %v499 = vpop.permute.xlu0 %498
    %502 = vset.pattern.permute.xlu0 20
    %503 = vperm.xlu0 %502, %v365
    %v504 = vpop.permute.xlu0 %503
    %507 = vset.pattern.permute.xlu0 20
    %508 = vperm.xlu0 %507, %v366
    %v509 = vpop.permute.xlu0 %508
    %512 = vset.pattern.permute.xlu0 20
    %513 = vperm.xlu0 %512, %v367
    %v514 = vpop.permute.xlu0 %513
    %517 = vset.pattern.permute.xlu0 20
    %518 = vperm.xlu0 %517, %v368
    %v519 = vpop.permute.xlu0 %518
    %522 = vset.pattern.permute.xlu0 20
    %523 = vperm.xlu0 %522, %v369
    %v524 = vpop.permute.xlu0 %523
    %527 = vset.pattern.permute.xlu0 20
    %528 = vperm.xlu0 %527, %v370
    %v529 = vpop.permute.xlu0 %528
    %532 = vset.pattern.permute.xlu0 20
    %533 = vperm.xlu0 %532, %v371
    %v534 = vpop.permute.xlu0 %533
    %537 = vset.pattern.permute.xlu0 20
    %538 = vperm.xlu0 %537, %v372
    %v539 = vpop.permute.xlu0 %538
    %542 = vset.pattern.permute.xlu0 20
    %543 = vperm.xlu0 %542, %v373
    %v544 = vpop.permute.xlu0 %543
    %547 = vset.pattern.permute.xlu0 20
    %548 = vperm.xlu0 %547, %v374
    %v549 = vpop.permute.xlu0 %548
    %552 = vset.pattern.permute.xlu0 20
    %553 = vperm.xlu0 %552, %v375
    %v554 = vpop.permute.xlu0 %553
    %557 = vset.pattern.permute.xlu0 20
    %558 = vperm.xlu0 %557, %v376
    %v559 = vpop.permute.xlu0 %558
    %562 = vset.pattern.permute.xlu0 20
    %563 = vperm.xlu0 %562, %v377
    %v564 = vpop.permute.xlu0 %563
    %567 = vset.pattern.permute.xlu0 20
    %568 = vperm.xlu0 %567, %v378
    %v569 = vpop.permute.xlu0 %568
    %572 = vset.pattern.permute.xlu0 20
    %573 = vperm.xlu0 %572, %v379
    %v574 = vpop.permute.xlu0 %573
    %577 = vset.pattern.permute.xlu0 20
    %578 = vperm.xlu0 %577, %v380
    %v579 = vpop.permute.xlu0 %578
    %582 = vset.pattern.permute.xlu0 20
    %583 = vperm.xlu0 %582, %v381
    %v584 = vpop.permute.xlu0 %583
    %587 = vset.pattern.permute.xlu0 20
    %588 = vperm.xlu0 %587, %v382
    %v589 = vpop.permute.xlu0 %588
    %592 = vset.pattern.permute.xlu0 20
    %593 = vperm.xlu0 %592, %v383
    %v594 = vpop.permute.xlu0 %593
    %597 = vset.pattern.permute.xlu0 20
    %598 = vperm.xlu0 %597, %v384
    %v599 = vpop.permute.xlu0 %598
    %602 = vset.pattern.permute.xlu0 20
    %603 = vperm.xlu0 %602, %v385
    %v604 = vpop.permute.xlu0 %603
    %607 = vset.pattern.permute.xlu0 20
    %608 = vperm.xlu0 %607, %v386
    %v609 = vpop.permute.xlu0 %608
    %612 = vset.pattern.permute.xlu0 20
    %613 = vperm.xlu0 %612, %v387
    %v614 = vpop.permute.xlu0 %613
    %617 = vset.pattern.permute.xlu0 20
    %618 = vperm.xlu0 %617, %v388
    %v619 = vpop.permute.xlu0 %618
    %622 = vset.pattern.permute.xlu0 20
    %623 = vperm.xlu0 %622, %v389
    %v624 = vpop.permute.xlu0 %623
    %627 = vset.pattern.permute.xlu0 20
    %628 = vperm.xlu0 %627, %v390
    %v629 = vpop.permute.xlu0 %628
    %632 = vset.pattern.permute.xlu0 20
    %633 = vperm.xlu0 %632, %v391
    %v634 = vpop.permute.xlu0 %633
    %637 = vset.pattern.permute.xlu0 20
    %638 = vperm.xlu0 %637, %v392
    %v639 = vpop.permute.xlu0 %638
    %642 = vset.pattern.permute.xlu0 20
    %643 = vperm.xlu0 %642, %v393
    %v644 = vpop.permute.xlu0 %643
    %647 = vset.pattern.permute.xlu0 20
    %648 = vperm.xlu0 %647, %v394
    %v649 = vpop.permute.xlu0 %648
    %652 = vset.pattern.permute.xlu0 20
    %653 = vperm.xlu0 %652, %v395
    %v654 = vpop.permute.xlu0 %653
    %657 = vset.pattern.permute.xlu0 20
    %658 = vperm.xlu0 %657, %v396
    %v659 = vpop.permute.xlu0 %658
    %662 = vset.pattern.permute.xlu0 20
    %663 = vperm.xlu0 %662, %v397
    %v664 = vpop.permute.xlu0 %663
    %667 = vset.pattern.permute.xlu0 20
    %668 = vperm.xlu0 %667, %v398
    %v669 = vpop.permute.xlu0 %668
    %672 = vset.pattern.permute.xlu0 20
    %673 = vperm.xlu0 %672, %v399
    %v674 = vpop.permute.xlu0 %673
    %677 = vset.pattern.permute.xlu0 20
    %678 = vperm.xlu0 %677, %v400
    %v679 = vpop.permute.xlu0 %678
    %682 = vset.pattern.permute.xlu0 20
    %683 = vperm.xlu0 %682, %v401
    %v684 = vpop.permute.xlu0 %683
    %687 = vset.pattern.permute.xlu0 20
    %688 = vperm.xlu0 %687, %v402
    %v689 = vpop.permute.xlu0 %688
    %692 = vset.pattern.permute.xlu0 20
    %693 = vperm.xlu0 %692, %v403
    %v694 = vpop.permute.xlu0 %693
    %697 = vset.pattern.permute.xlu0 20
    %698 = vperm.xlu0 %697, %v404
    %v699 = vpop.permute.xlu0 %698
    %702 = vset.pattern.permute.xlu0 20
    %703 = vperm.xlu0 %702, %v405
    %v704 = vpop.permute.xlu0 %703
    %707 = vset.pattern.permute.xlu0 20
    %708 = vperm.xlu0 %707, %v406
    %v709 = vpop.permute.xlu0 %708
    %712 = vset.pattern.permute.xlu0 20
    %713 = vperm.xlu0 %712, %v407
    %v714 = vpop.permute.xlu0 %713
    %717 = vset.pattern.permute.xlu0 20
    %718 = vperm.xlu0 %717, %v408
    %v719 = vpop.permute.xlu0 %718
    %722 = vset.pattern.permute.xlu0 20
    %723 = vperm.xlu0 %722, %v409
    %v724 = vpop.permute.xlu0 %723
    %727 = vset.pattern.permute.xlu0 20
    %728 = vperm.xlu0 %727, %v410
    %v729 = vpop.permute.xlu0 %728
    %v731 = vmul.f32 %v414, %v217
    %v732 = vmul.f32 %v419, %v217
    %v733 = vmul.f32 %v424, %v217
    %v734 = vmul.f32 %v429, %v217
    %v735 = vmul.f32 %v434, %v217
    %v736 = vmul.f32 %v439, %v217
    %v737 = vmul.f32 %v444, %v217
    %v738 = vmul.f32 %v449, %v217
    %v739 = vmul.f32 %v454, %v217
    %v740 = vmul.f32 %v459, %v217
    %v741 = vmul.f32 %v464, %v217
    %v742 = vmul.f32 %v469, %v217
    %v743 = vmul.f32 %v474, %v217
    %v744 = vmul.f32 %v479, %v217
    %v745 = vmul.f32 %v484, %v217
    %v746 = vmul.f32 %v489, %v217
    %v747 = vmul.f32 %v494, %v217
    %v748 = vmul.f32 %v499, %v217
    %v749 = vmul.f32 %v504, %v217
    %v750 = vmul.f32 %v509, %v217
    %v751 = vmul.f32 %v514, %v217
    %v752 = vmul.f32 %v519, %v217
    %v753 = vmul.f32 %v524, %v217
    %v754 = vmul.f32 %v529, %v217
    %v755 = vmul.f32 %v534, %v217
    %v756 = vmul.f32 %v539, %v217
    %v757 = vmul.f32 %v544, %v217
    %v758 = vmul.f32 %v549, %v217
    %v759 = vmul.f32 %v554, %v217
    %v760 = vmul.f32 %v559, %v217
    %v761 = vmul.f32 %v564, %v217
    %v762 = vmul.f32 %v569, %v217
    %v763 = vmul.f32 %v574, %v217
    %v764 = vmul.f32 %v579, %v217
    %v765 = vmul.f32 %v584, %v217
    %v766 = vmul.f32 %v589, %v217
    %v767 = vmul.f32 %v594, %v217
    %v768 = vmul.f32 %v599, %v217
    %v769 = vmul.f32 %v604, %v217
    %v770 = vmul.f32 %v609, %v217
    %v771 = vmul.f32 %v614, %v217
    %v772 = vmul.f32 %v619, %v217
    %v773 = vmul.f32 %v624, %v217
    %v774 = vmul.f32 %v629, %v217
    %v775 = vmul.f32 %v634, %v217
    %v776 = vmul.f32 %v639, %v217
    %v777 = vmul.f32 %v644, %v217
    %v778 = vmul.f32 %v649, %v217
    %v779 = vmul.f32 %v654, %v217
    %v780 = vmul.f32 %v659, %v217
    %v781 = vmul.f32 %v664, %v217
    %v782 = vmul.f32 %v669, %v217
    %v783 = vmul.f32 %v674, %v217
    %v784 = vmul.f32 %v679, %v217
    %v785 = vmul.f32 %v684, %v217
    %v786 = vmul.f32 %v689, %v217
    %v787 = vmul.f32 %v694, %v217
    %v788 = vmul.f32 %v699, %v217
    %v789 = vmul.f32 %v704, %v217
    %v790 = vmul.f32 %v709, %v217
    %v791 = vmul.f32 %v714, %v217
    %v792 = vmul.f32 %v719, %v217
    %v793 = vmul.f32 %v724, %v217
    %v794 = vmul.f32 %v729, %v217
    %v795 = vsub.f32 1.0, %v347
    %v796 = vsub.f32 1.0, %v348
    %v797 = vsub.f32 1.0, %v349
    %v798 = vsub.f32 1.0, %v350
    %v799 = vsub.f32 1.0, %v351
    %v800 = vsub.f32 1.0, %v352
    %v801 = vsub.f32 1.0, %v353
    %v802 = vsub.f32 1.0, %v354
    %v803 = vsub.f32 1.0, %v355
    %v804 = vsub.f32 1.0, %v356
    %v805 = vsub.f32 1.0, %v357
    %v806 = vsub.f32 1.0, %v358
    %v807 = vsub.f32 1.0, %v359
    %v808 = vsub.f32 1.0, %v360
    %v809 = vsub.f32 1.0, %v361
    %v810 = vsub.f32 1.0, %v362
    %v811 = vsub.f32 1.0, %v363
    %v812 = vsub.f32 1.0, %v364
    %v813 = vsub.f32 1.0, %v365
    %v814 = vsub.f32 1.0, %v366
    %v815 = vsub.f32 1.0, %v367
    %v816 = vsub.f32 1.0, %v368
    %v817 = vsub.f32 1.0, %v369
    %v818 = vsub.f32 1.0, %v370
    %v819 = vsub.f32 1.0, %v371
    %v820 = vsub.f32 1.0, %v372
    %v821 = vsub.f32 1.0, %v373
    %v822 = vsub.f32 1.0, %v374
    %v823 = vsub.f32 1.0, %v375
    %v824 = vsub.f32 1.0, %v376
    %v825 = vsub.f32 1.0, %v377
    %v826 = vsub.f32 1.0, %v378
    %v827 = vsub.f32 1.0, %v379
    %v828 = vsub.f32 1.0, %v380
    %v829 = vsub.f32 1.0, %v381
    %v830 = vsub.f32 1.0, %v382
    %v831 = vsub.f32 1.0, %v383
    %v832 = vsub.f32 1.0, %v384
    %v833 = vsub.f32 1.0, %v385
    %v834 = vsub.f32 1.0, %v386
    %v835 = vsub.f32 1.0, %v387
    %v836 = vsub.f32 1.0, %v388
    %v837 = vsub.f32 1.0, %v389
    %v838 = vsub.f32 1.0, %v390
    %v839 = vsub.f32 1.0, %v391
    %v840 = vsub.f32 1.0, %v392
    %v841 = vsub.f32 1.0, %v393
    %v842 = vsub.f32 1.0, %v394
    %v843 = vsub.f32 1.0, %v395
    %v844 = vsub.f32 1.0, %v396
    %v845 = vsub.f32 1.0, %v397
    %v846 = vsub.f32 1.0, %v398
    %v847 = vsub.f32 1.0, %v399
    %v848 = vsub.f32 1.0, %v400
    %v849 = vsub.f32 1.0, %v401
    %v850 = vsub.f32 1.0, %v402
    %v851 = vsub.f32 1.0, %v403
    %v852 = vsub.f32 1.0, %v404
    %v853 = vsub.f32 1.0, %v405
    %v854 = vsub.f32 1.0, %v406
    %v855 = vsub.f32 1.0, %v407
    %v856 = vsub.f32 1.0, %v408
    %v857 = vsub.f32 1.0, %v409
    %v858 = vsub.f32 1.0, %v410
    %860 = vset.pattern.permute.xlu0 20
    %861 = vperm.xlu0 %860, %v795
    %v862 = vpop.permute.xlu0 %861
    %865 = vset.pattern.permute.xlu0 20
    %866 = vperm.xlu0 %865, %v796
    %v867 = vpop.permute.xlu0 %866
    %870 = vset.pattern.permute.xlu0 20
    %871 = vperm.xlu0 %870, %v797
    %v872 = vpop.permute.xlu0 %871
    %875 = vset.pattern.permute.xlu0 20
    %876 = vperm.xlu0 %875, %v798
    %v877 = vpop.permute.xlu0 %876
    %880 = vset.pattern.permute.xlu0 20
    %881 = vperm.xlu0 %880, %v799
    %v882 = vpop.permute.xlu0 %881
    %885 = vset.pattern.permute.xlu0 20
    %886 = vperm.xlu0 %885, %v800
    %v887 = vpop.permute.xlu0 %886
    %890 = vset.pattern.permute.xlu0 20
    %891 = vperm.xlu0 %890, %v801
    %v892 = vpop.permute.xlu0 %891
    %895 = vset.pattern.permute.xlu0 20
    %896 = vperm.xlu0 %895, %v802
    %v897 = vpop.permute.xlu0 %896
    %900 = vset.pattern.permute.xlu0 20
    %901 = vperm.xlu0 %900, %v803
    %v902 = vpop.permute.xlu0 %901
    %905 = vset.pattern.permute.xlu0 20
    %906 = vperm.xlu0 %905, %v804
    %v907 = vpop.permute.xlu0 %906
    %910 = vset.pattern.permute.xlu0 20
    %911 = vperm.xlu0 %910, %v805
    %v912 = vpop.permute.xlu0 %911
    %915 = vset.pattern.permute.xlu0 20
    %916 = vperm.xlu0 %915, %v806
    %v917 = vpop.permute.xlu0 %916
    %920 = vset.pattern.permute.xlu0 20
    %921 = vperm.xlu0 %920, %v807
    %v922 = vpop.permute.xlu0 %921
    %925 = vset.pattern.permute.xlu0 20
    %926 = vperm.xlu0 %925, %v808
    %v927 = vpop.permute.xlu0 %926
    %930 = vset.pattern.permute.xlu0 20
    %931 = vperm.xlu0 %930, %v809
    %v932 = vpop.permute.xlu0 %931
    %935 = vset.pattern.permute.xlu0 20
    %936 = vperm.xlu0 %935, %v810
    %v937 = vpop.permute.xlu0 %936
    %940 = vset.pattern.permute.xlu0 20
    %941 = vperm.xlu0 %940, %v811
    %v942 = vpop.permute.xlu0 %941
    %945 = vset.pattern.permute.xlu0 20
    %946 = vperm.xlu0 %945, %v812
    %v947 = vpop.permute.xlu0 %946
    %950 = vset.pattern.permute.xlu0 20
    %951 = vperm.xlu0 %950, %v813
    %v952 = vpop.permute.xlu0 %951
    %955 = vset.pattern.permute.xlu0 20
    %956 = vperm.xlu0 %955, %v814
    %v957 = vpop.permute.xlu0 %956
    %960 = vset.pattern.permute.xlu0 20
    %961 = vperm.xlu0 %960, %v815
    %v962 = vpop.permute.xlu0 %961
    %965 = vset.pattern.permute.xlu0 20
    %966 = vperm.xlu0 %965, %v816
    %v967 = vpop.permute.xlu0 %966
    %970 = vset.pattern.permute.xlu0 20
    %971 = vperm.xlu0 %970, %v817
    %v972 = vpop.permute.xlu0 %971
    %975 = vset.pattern.permute.xlu0 20
    %976 = vperm.xlu0 %975, %v818
    %v977 = vpop.permute.xlu0 %976
    %980 = vset.pattern.permute.xlu0 20
    %981 = vperm.xlu0 %980, %v819
    %v982 = vpop.permute.xlu0 %981
    %985 = vset.pattern.permute.xlu0 20
    %986 = vperm.xlu0 %985, %v820
    %v987 = vpop.permute.xlu0 %986
    %990 = vset.pattern.permute.xlu0 20
    %991 = vperm.xlu0 %990, %v821
    %v992 = vpop.permute.xlu0 %991
    %995 = vset.pattern.permute.xlu0 20
    %996 = vperm.xlu0 %995, %v822
    %v997 = vpop.permute.xlu0 %996
    %1000 = vset.pattern.permute.xlu0 20
    %1001 = vperm.xlu0 %1000, %v823
    %v1002 = vpop.permute.xlu0 %1001
    %1005 = vset.pattern.permute.xlu0 20
    %1006 = vperm.xlu0 %1005, %v824
    %v1007 = vpop.permute.xlu0 %1006
    %1010 = vset.pattern.permute.xlu0 20
    %1011 = vperm.xlu0 %1010, %v825
    %v1012 = vpop.permute.xlu0 %1011
    %1015 = vset.pattern.permute.xlu0 20
    %1016 = vperm.xlu0 %1015, %v826
    %v1017 = vpop.permute.xlu0 %1016
    %1020 = vset.pattern.permute.xlu0 20
    %1021 = vperm.xlu0 %1020, %v827
    %v1022 = vpop.permute.xlu0 %1021
    %1025 = vset.pattern.permute.xlu0 20
    %1026 = vperm.xlu0 %1025, %v828
    %v1027 = vpop.permute.xlu0 %1026
    %1030 = vset.pattern.permute.xlu0 20
    %1031 = vperm.xlu0 %1030, %v829
    %v1032 = vpop.permute.xlu0 %1031
    %1035 = vset.pattern.permute.xlu0 20
    %1036 = vperm.xlu0 %1035, %v830
    %v1037 = vpop.permute.xlu0 %1036
    %1040 = vset.pattern.permute.xlu0 20
    %1041 = vperm.xlu0 %1040, %v831
    %v1042 = vpop.permute.xlu0 %1041
    %1045 = vset.pattern.permute.xlu0 20
    %1046 = vperm.xlu0 %1045, %v832
    %v1047 = vpop.permute.xlu0 %1046
    %1050 = vset.pattern.permute.xlu0 20
    %1051 = vperm.xlu0 %1050, %v833
    %v1052 = vpop.permute.xlu0 %1051
    %1055 = vset.pattern.permute.xlu0 20
    %1056 = vperm.xlu0 %1055, %v834
    %v1057 = vpop.permute.xlu0 %1056
    %1060 = vset.pattern.permute.xlu0 20
    %1061 = vperm.xlu0 %1060, %v835
    %v1062 = vpop.permute.xlu0 %1061
    %1065 = vset.pattern.permute.xlu0 20
    %1066 = vperm.xlu0 %1065, %v836
    %v1067 = vpop.permute.xlu0 %1066
    %1070 = vset.pattern.permute.xlu0 20
    %1071 = vperm.xlu0 %1070, %v837
    %v1072 = vpop.permute.xlu0 %1071
    %1075 = vset.pattern.permute.xlu0 20
    %1076 = vperm.xlu0 %1075, %v838
    %v1077 = vpop.permute.xlu0 %1076
    %1080 = vset.pattern.permute.xlu0 20
    %1081 = vperm.xlu0 %1080, %v839
    %v1082 = vpop.permute.xlu0 %1081
    %1085 = vset.pattern.permute.xlu0 20
    %1086 = vperm.xlu0 %1085, %v840
    %v1087 = vpop.permute.xlu0 %1086
    %1090 = vset.pattern.permute.xlu0 20
    %1091 = vperm.xlu0 %1090, %v841
    %v1092 = vpop.permute.xlu0 %1091
    %1095 = vset.pattern.permute.xlu0 20
    %1096 = vperm.xlu0 %1095, %v842
    %v1097 = vpop.permute.xlu0 %1096
    %1100 = vset.pattern.permute.xlu0 20
    %1101 = vperm.xlu0 %1100, %v843
    %v1102 = vpop.permute.xlu0 %1101
    %1105 = vset.pattern.permute.xlu0 20
    %1106 = vperm.xlu0 %1105, %v844
    %v1107 = vpop.permute.xlu0 %1106
    %1110 = vset.pattern.permute.xlu0 20
    %1111 = vperm.xlu0 %1110, %v845
    %v1112 = vpop.permute.xlu0 %1111
    %1115 = vset.pattern.permute.xlu0 20
    %1116 = vperm.xlu0 %1115, %v846
    %v1117 = vpop.permute.xlu0 %1116
    %1120 = vset.pattern.permute.xlu0 20
    %1121 = vperm.xlu0 %1120, %v847
    %v1122 = vpop.permute.xlu0 %1121
    %1125 = vset.pattern.permute.xlu0 20
    %1126 = vperm.xlu0 %1125, %v848
    %v1127 = vpop.permute.xlu0 %1126
    %1130 = vset.pattern.permute.xlu0 20
    %1131 = vperm.xlu0 %1130, %v849
    %v1132 = vpop.permute.xlu0 %1131
    %1135 = vset.pattern.permute.xlu0 20
    %1136 = vperm.xlu0 %1135, %v850
    %v1137 = vpop.permute.xlu0 %1136
    %1140 = vset.pattern.permute.xlu0 20
    %1141 = vperm.xlu0 %1140, %v851
    %v1142 = vpop.permute.xlu0 %1141
    %1145 = vset.pattern.permute.xlu0 20
    %1146 = vperm.xlu0 %1145, %v852
    %v1147 = vpop.permute.xlu0 %1146
    %1150 = vset.pattern.permute.xlu0 20
    %1151 = vperm.xlu0 %1150, %v853
    %v1152 = vpop.permute.xlu0 %1151
    %1155 = vset.pattern.permute.xlu0 20
    %1156 = vperm.xlu0 %1155, %v854
    %v1157 = vpop.permute.xlu0 %1156
    %1160 = vset.pattern.permute.xlu0 20
    %1161 = vperm.xlu0 %1160, %v855
    %v1162 = vpop.permute.xlu0 %1161
    %1165 = vset.pattern.permute.xlu0 20
    %1166 = vperm.xlu0 %1165, %v856
    %v1167 = vpop.permute.xlu0 %1166
    %1170 = vset.pattern.permute.xlu0 20
    %1171 = vperm.xlu0 %1170, %v857
    %v1172 = vpop.permute.xlu0 %1171
    %1175 = vset.pattern.permute.xlu0 20
    %1176 = vperm.xlu0 %1175, %v858
    %v1177 = vpop.permute.xlu0 %1176
    %v1179 = vmul.f32 %v862, %v218
    %v1180 = vmul.f32 %v867, %v218
    %v1181 = vmul.f32 %v872, %v218
    %v1182 = vmul.f32 %v877, %v218
    %v1183 = vmul.f32 %v882, %v218
    %v1184 = vmul.f32 %v887, %v218
    %v1185 = vmul.f32 %v892, %v218
    %v1186 = vmul.f32 %v897, %v218
    %v1187 = vmul.f32 %v902, %v218
    %v1188 = vmul.f32 %v907, %v218
    %v1189 = vmul.f32 %v912, %v218
    %v1190 = vmul.f32 %v917, %v218
    %v1191 = vmul.f32 %v922, %v218
    %v1192 = vmul.f32 %v927, %v218
    %v1193 = vmul.f32 %v932, %v218
    %v1194 = vmul.f32 %v937, %v218
    %v1195 = vmul.f32 %v942, %v218
    %v1196 = vmul.f32 %v947, %v218
    %v1197 = vmul.f32 %v952, %v218
    %v1198 = vmul.f32 %v957, %v218
    %v1199 = vmul.f32 %v962, %v218
    %v1200 = vmul.f32 %v967, %v218
    %v1201 = vmul.f32 %v972, %v218
    %v1202 = vmul.f32 %v977, %v218
    %v1203 = vmul.f32 %v982, %v218
    %v1204 = vmul.f32 %v987, %v218
    %v1205 = vmul.f32 %v992, %v218
    %v1206 = vmul.f32 %v997, %v218
    %v1207 = vmul.f32 %v1002, %v218
    %v1208 = vmul.f32 %v1007, %v218
    %v1209 = vmul.f32 %v1012, %v218
    %v1210 = vmul.f32 %v1017, %v218
    %v1211 = vmul.f32 %v1022, %v218
    %v1212 = vmul.f32 %v1027, %v218
    %v1213 = vmul.f32 %v1032, %v218
    %v1214 = vmul.f32 %v1037, %v218
    %v1215 = vmul.f32 %v1042, %v218
    %v1216 = vmul.f32 %v1047, %v218
    %v1217 = vmul.f32 %v1052, %v218
    %v1218 = vmul.f32 %v1057, %v218
    %v1219 = vmul.f32 %v1062, %v218
    %v1220 = vmul.f32 %v1067, %v218
    %v1221 = vmul.f32 %v1072, %v218
    %v1222 = vmul.f32 %v1077, %v218
    %v1223 = vmul.f32 %v1082, %v218
    %v1224 = vmul.f32 %v1087, %v218
    %v1225 = vmul.f32 %v1092, %v218
    %v1226 = vmul.f32 %v1097, %v218
    %v1227 = vmul.f32 %v1102, %v218
    %v1228 = vmul.f32 %v1107, %v218
    %v1229 = vmul.f32 %v1112, %v218
    %v1230 = vmul.f32 %v1117, %v218
    %v1231 = vmul.f32 %v1122, %v218
    %v1232 = vmul.f32 %v1127, %v218
    %v1233 = vmul.f32 %v1132, %v218
    %v1234 = vmul.f32 %v1137, %v218
    %v1235 = vmul.f32 %v1142, %v218
    %v1236 = vmul.f32 %v1147, %v218
    %v1237 = vmul.f32 %v1152, %v218
    %v1238 = vmul.f32 %v1157, %v218
    %v1239 = vmul.f32 %v1162, %v218
    %v1240 = vmul.f32 %v1167, %v218
    %v1241 = vmul.f32 %v1172, %v218
    %v1242 = vmul.f32 %v1177, %v218
    %v1243 = vadd.f32 %v731, %v1179
    %v1244 = vadd.f32 %v732, %v1180
    %v1245 = vadd.f32 %v733, %v1181
    %v1246 = vadd.f32 %v734, %v1182
    %v1247 = vadd.f32 %v735, %v1183
    %v1248 = vadd.f32 %v736, %v1184
    %v1249 = vadd.f32 %v737, %v1185
    %v1250 = vadd.f32 %v738, %v1186
    %v1251 = vadd.f32 %v739, %v1187
    %v1252 = vadd.f32 %v740, %v1188
    %v1253 = vadd.f32 %v741, %v1189
    %v1254 = vadd.f32 %v742, %v1190
    %v1255 = vadd.f32 %v743, %v1191
    %v1256 = vadd.f32 %v744, %v1192
    %v1257 = vadd.f32 %v745, %v1193
    %v1258 = vadd.f32 %v746, %v1194
    %v1259 = vadd.f32 %v747, %v1195
    %v1260 = vadd.f32 %v748, %v1196
    %v1261 = vadd.f32 %v749, %v1197
    %v1262 = vadd.f32 %v750, %v1198
    %v1263 = vadd.f32 %v751, %v1199
    %v1264 = vadd.f32 %v752, %v1200
    %v1265 = vadd.f32 %v753, %v1201
    %v1266 = vadd.f32 %v754, %v1202
    %v1267 = vadd.f32 %v755, %v1203
    %v1268 = vadd.f32 %v756, %v1204
    %v1269 = vadd.f32 %v757, %v1205
    %v1270 = vadd.f32 %v758, %v1206
    %v1271 = vadd.f32 %v759, %v1207
    %v1272 = vadd.f32 %v760, %v1208
    %v1273 = vadd.f32 %v761, %v1209
    %v1274 = vadd.f32 %v762, %v1210
    %v1275 = vadd.f32 %v763, %v1211
    %v1276 = vadd.f32 %v764, %v1212
    %v1277 = vadd.f32 %v765, %v1213
    %v1278 = vadd.f32 %v766, %v1214
    %v1279 = vadd.f32 %v767, %v1215
    %v1280 = vadd.f32 %v768, %v1216
    %v1281 = vadd.f32 %v769, %v1217
    %v1282 = vadd.f32 %v770, %v1218
    %v1283 = vadd.f32 %v771, %v1219
    %v1284 = vadd.f32 %v772, %v1220
    %v1285 = vadd.f32 %v773, %v1221
    %v1286 = vadd.f32 %v774, %v1222
    %v1287 = vadd.f32 %v775, %v1223
    %v1288 = vadd.f32 %v776, %v1224
    %v1289 = vadd.f32 %v777, %v1225
    %v1290 = vadd.f32 %v778, %v1226
    %v1291 = vadd.f32 %v779, %v1227
    %v1292 = vadd.f32 %v780, %v1228
    %v1293 = vadd.f32 %v781, %v1229
    %v1294 = vadd.f32 %v782, %v1230
    %v1295 = vadd.f32 %v783, %v1231
    %v1296 = vadd.f32 %v784, %v1232
    %v1297 = vadd.f32 %v785, %v1233
    %v1298 = vadd.f32 %v786, %v1234
    %v1299 = vadd.f32 %v787, %v1235
    %v1300 = vadd.f32 %v788, %v1236
    %v1301 = vadd.f32 %v789, %v1237
    %v1302 = vadd.f32 %v790, %v1238
    %v1303 = vadd.f32 %v791, %v1239
    %v1304 = vadd.f32 %v792, %v1240
    %v1305 = vadd.f32 %v793, %v1241
    %v1306 = vadd.f32 %v794, %v1242
    %v1307 = vsub.f32 %v81, %v145
    %v1308 = vsub.f32 %v82, %v146
    %v1309 = vsub.f32 %v83, %v147
    %v1310 = vsub.f32 %v84, %v148
    %v1311 = vsub.f32 %v85, %v149
    %v1312 = vsub.f32 %v86, %v150
    %v1313 = vsub.f32 %v87, %v151
    %v1314 = vsub.f32 %v88, %v152
    %v1315 = vsub.f32 %v89, %v153
    %v1316 = vsub.f32 %v90, %v154
    %v1317 = vsub.f32 %v91, %v155
    %v1318 = vsub.f32 %v92, %v156
    %v1319 = vsub.f32 %v93, %v157
    %v1320 = vsub.f32 %v94, %v158
    %v1321 = vsub.f32 %v95, %v159
    %v1322 = vsub.f32 %v96, %v160
    %v1323 = vsub.f32 %v97, %v161
    %v1324 = vsub.f32 %v98, %v162
    %v1325 = vsub.f32 %v99, %v163
    %v1326 = vsub.f32 %v100, %v164
    %v1327 = vsub.f32 %v101, %v165
    %v1328 = vsub.f32 %v102, %v166
    %v1329 = vsub.f32 %v103, %v167
    %v1330 = vsub.f32 %v104, %v168
    %v1331 = vsub.f32 %v105, %v169
    %v1332 = vsub.f32 %v106, %v170
    %v1333 = vsub.f32 %v107, %v171
    %v1334 = vsub.f32 %v108, %v172
    %v1335 = vsub.f32 %v109, %v173
    %v1336 = vsub.f32 %v110, %v174
    %v1337 = vsub.f32 %v111, %v175
    %v1338 = vsub.f32 %v112, %v176
    %v1339 = vsub.f32 %v113, %v177
    %v1340 = vsub.f32 %v114, %v178
    %v1341 = vsub.f32 %v115, %v179
    %v1342 = vsub.f32 %v116, %v180
    %v1343 = vsub.f32 %v117, %v181
    %v1344 = vsub.f32 %v118, %v182
    %v1345 = vsub.f32 %v119, %v183
    %v1346 = vsub.f32 %v120, %v184
    %v1347 = vsub.f32 %v121, %v185
    %v1348 = vsub.f32 %v122, %v186
    %v1349 = vsub.f32 %v123, %v187
    %v1350 = vsub.f32 %v124, %v188
    %v1351 = vsub.f32 %v125, %v189
    %v1352 = vsub.f32 %v126, %v190
    %v1353 = vsub.f32 %v127, %v191
    %v1354 = vsub.f32 %v128, %v192
    %v1355 = vsub.f32 %v129, %v193
    %v1356 = vsub.f32 %v130, %v194
    %v1357 = vsub.f32 %v131, %v195
    %v1358 = vsub.f32 %v132, %v196
    %v1359 = vsub.f32 %v133, %v197
    %v1360 = vsub.f32 %v134, %v198
    %v1361 = vsub.f32 %v135, %v199
    %v1362 = vsub.f32 %v136, %v200
    %v1363 = vsub.f32 %v137, %v201
    %v1364 = vsub.f32 %v138, %v202
    %v1365 = vsub.f32 %v139, %v203
    %v1366 = vsub.f32 %v140, %v204
    %v1367 = vsub.f32 %v141, %v205
    %v1368 = vsub.f32 %v142, %v206
    %v1369 = vsub.f32 %v143, %v207
    %v1370 = vsub.f32 %v144, %v208
    %v1371 = vld [vmem:[#allocation2] sm:$0xff]
    %v1372 = vld [vmem:[#allocation2 + $0x8] sm:$0xff]
    %v1373 = vld [vmem:[#allocation2 + $0x10] sm:$0xff]
    %v1374 = vld [vmem:[#allocation2 + $0x18] sm:$0xff]
    %v1375 = vld [vmem:[#allocation2 + $0x20] sm:$0xff]
    %v1376 = vld [vmem:[#allocation2 + $0x28] sm:$0xff]
    %v1377 = vld [vmem:[#allocation2 + $0x30] sm:$0xff]
    %v1378 = vld [vmem:[#allocation2 + $0x38] sm:$0xff]
    %v1379 = vld [vmem:[#allocation2 + $0x40] sm:$0xff]
    %v1380 = vld [vmem:[#allocation2 + $0x48] sm:$0xff]
    %v1381 = vld [vmem:[#allocation2 + $0x50] sm:$0xff]
    %v1382 = vld [vmem:[#allocation2 + $0x58] sm:$0xff]
    %v1383 = vld [vmem:[#allocation2 + $0x60] sm:$0xff]
    %v1384 = vld [vmem:[#allocation2 + $0x68] sm:$0xff]
    %v1385 = vld [vmem:[#allocation2 + $0x70] sm:$0xff]
    %v1386 = vld [vmem:[#allocation2 + $0x78] sm:$0xff]
    %v1387 = vld [vmem:[#allocation2 + $0x80] sm:$0xff]
    %v1388 = vld [vmem:[#allocation2 + $0x88] sm:$0xff]
    %v1389 = vld [vmem:[#allocation2 + $0x90] sm:$0xff]
    %v1390 = vld [vmem:[#allocation2 + $0x98] sm:$0xff]
    %v1391 = vld [vmem:[#allocation2 + $0xa0] sm:$0xff]
    %v1392 = vld [vmem:[#allocation2 + $0xa8] sm:$0xff]
    %v1393 = vld [vmem:[#allocation2 + $0xb0] sm:$0xff]
    %v1394 = vld [vmem:[#allocation2 + $0xb8] sm:$0xff]
    %v1395 = vld [vmem:[#allocation2 + $0xc0] sm:$0xff]
    %v1396 = vld [vmem:[#allocation2 + $0xc8] sm:$0xff]
    %v1397 = vld [vmem:[#allocation2 + $0xd0] sm:$0xff]
    %v1398 = vld [vmem:[#allocation2 + $0xd8] sm:$0xff]
    %v1399 = vld [vmem:[#allocation2 + $0xe0] sm:$0xff]
    %v1400 = vld [vmem:[#allocation2 + $0xe8] sm:$0xff]
    %v1401 = vld [vmem:[#allocation2 + $0xf0] sm:$0xff]
    %v1402 = vld [vmem:[#allocation2 + $0xf8] sm:$0xff]
    %v1403 = vld [vmem:[#allocation2 + $0x100] sm:$0xff]
    %v1404 = vld [vmem:[#allocation2 + $0x108] sm:$0xff]
    %v1405 = vld [vmem:[#allocation2 + $0x110] sm:$0xff]
    %v1406 = vld [vmem:[#allocation2 + $0x118] sm:$0xff]
    %v1407 = vld [vmem:[#allocation2 + $0x120] sm:$0xff]
    %v1408 = vld [vmem:[#allocation2 + $0x128] sm:$0xff]
    %v1409 = vld [vmem:[#allocation2 + $0x130] sm:$0xff]
    %v1410 = vld [vmem:[#allocation2 + $0x138] sm:$0xff]
    %v1411 = vld [vmem:[#allocation2 + $0x140] sm:$0xff]
    %v1412 = vld [vmem:[#allocation2 + $0x148] sm:$0xff]
    %v1413 = vld [vmem:[#allocation2 + $0x150] sm:$0xff]
    %v1414 = vld [vmem:[#allocation2 + $0x158] sm:$0xff]
    %v1415 = vld [vmem:[#allocation2 + $0x160] sm:$0xff]
    %v1416 = vld [vmem:[#allocation2 + $0x168] sm:$0xff]
    %v1417 = vld [vmem:[#allocation2 + $0x170] sm:$0xff]
    %v1418 = vld [vmem:[#allocation2 + $0x178] sm:$0xff]
    %v1419 = vld [vmem:[#allocation2 + $0x180] sm:$0xff]
    %v1420 = vld [vmem:[#allocation2 + $0x188] sm:$0xff]
    %v1421 = vld [vmem:[#allocation2 + $0x190] sm:$0xff]
    %v1422 = vld [vmem:[#allocation2 + $0x198] sm:$0xff]
    %v1423 = vld [vmem:[#allocation2 + $0x1a0] sm:$0xff]
    %v1424 = vld [vmem:[#allocation2 + $0x1a8] sm:$0xff]
    %v1425 = vld [vmem:[#allocation2 + $0x1b0] sm:$0xff]
    %v1426 = vld [vmem:[#allocation2 + $0x1b8] sm:$0xff]
    %v1427 = vld [vmem:[#allocation2 + $0x1c0] sm:$0xff]
    %v1428 = vld [vmem:[#allocation2 + $0x1c8] sm:$0xff]
    %v1429 = vld [vmem:[#allocation2 + $0x1d0] sm:$0xff]
    %v1430 = vld [vmem:[#allocation2 + $0x1d8] sm:$0xff]
    %v1431 = vld [vmem:[#allocation2 + $0x1e0] sm:$0xff]
    %v1432 = vld [vmem:[#allocation2 + $0x1e8] sm:$0xff]
    %v1433 = vld [vmem:[#allocation2 + $0x1f0] sm:$0xff]
    %v1434 = vld [vmem:[#allocation2 + $0x1f8] sm:$0xff]
    %v1435 = vmul.f32 %v1243, %v1307
    %v1436 = vmul.f32 %v1244, %v1308
    %v1437 = vmul.f32 %v1245, %v1309
    %v1438 = vmul.f32 %v1246, %v1310
    %v1439 = vmul.f32 %v1247, %v1311
    %v1440 = vmul.f32 %v1248, %v1312
    %v1441 = vmul.f32 %v1249, %v1313
    %v1442 = vmul.f32 %v1250, %v1314
    %v1443 = vmul.f32 %v1251, %v1315
    %v1444 = vmul.f32 %v1252, %v1316
    %v1445 = vmul.f32 %v1253, %v1317
    %v1446 = vmul.f32 %v1254, %v1318
    %v1447 = vmul.f32 %v1255, %v1319
    %v1448 = vmul.f32 %v1256, %v1320
    %v1449 = vmul.f32 %v1257, %v1321
    %v1450 = vmul.f32 %v1258, %v1322
    %v1451 = vmul.f32 %v1259, %v1323
    %v1452 = vmul.f32 %v1260, %v1324
    %v1453 = vmul.f32 %v1261, %v1325
    %v1454 = vmul.f32 %v1262, %v1326
    %v1455 = vmul.f32 %v1263, %v1327
    %v1456 = vmul.f32 %v1264, %v1328
    %v1457 = vmul.f32 %v1265, %v1329
    %v1458 = vmul.f32 %v1266, %v1330
    %v1459 = vmul.f32 %v1267, %v1331
    %v1460 = vmul.f32 %v1268, %v1332
    %v1461 = vmul.f32 %v1269, %v1333
    %v1462 = vmul.f32 %v1270, %v1334
    %v1463 = vmul.f32 %v1271, %v1335
    %v1464 = vmul.f32 %v1272, %v1336
    %v1465 = vmul.f32 %v1273, %v1337
    %v1466 = vmul.f32 %v1274, %v1338
    %v1467 = vmul.f32 %v1275, %v1339
    %v1468 = vmul.f32 %v1276, %v1340
    %v1469 = vmul.f32 %v1277, %v1341
    %v1470 = vmul.f32 %v1278, %v1342
    %v1471 = vmul.f32 %v1279, %v1343
    %v1472 = vmul.f32 %v1280, %v1344
    %v1473 = vmul.f32 %v1281, %v1345
    %v1474 = vmul.f32 %v1282, %v1346
    %v1475 = vmul.f32 %v1283, %v1347
    %v1476 = vmul.f32 %v1284, %v1348
    %v1477 = vmul.f32 %v1285, %v1349
    %v1478 = vmul.f32 %v1286, %v1350
    %v1479 = vmul.f32 %v1287, %v1351
    %v1480 = vmul.f32 %v1288, %v1352
    %v1481 = vmul.f32 %v1289, %v1353
    %v1482 = vmul.f32 %v1290, %v1354
    %v1483 = vmul.f32 %v1291, %v1355
    %v1484 = vmul.f32 %v1292, %v1356
    %v1485 = vmul.f32 %v1293, %v1357
    %v1486 = vmul.f32 %v1294, %v1358
    %v1487 = vmul.f32 %v1295, %v1359
    %v1488 = vmul.f32 %v1296, %v1360
    %v1489 = vmul.f32 %v1297, %v1361
    %v1490 = vmul.f32 %v1298, %v1362
    %v1491 = vmul.f32 %v1299, %v1363
    %v1492 = vmul.f32 %v1300, %v1364
    %v1493 = vmul.f32 %v1301, %v1365
    %v1494 = vmul.f32 %v1302, %v1366
    %v1495 = vmul.f32 %v1303, %v1367
    %v1496 = vmul.f32 %v1304, %v1368
    %v1497 = vmul.f32 %v1305, %v1369
    %v1498 = vmul.f32 %v1306, %v1370
    %v1499 = vmul.f32 %v1435, %v1307
    %v1500 = vmul.f32 %v1436, %v1308
    %v1501 = vmul.f32 %v1437, %v1309
    %v1502 = vmul.f32 %v1438, %v1310
    %v1503 = vmul.f32 %v1439, %v1311
    %v1504 = vmul.f32 %v1440, %v1312
    %v1505 = vmul.f32 %v1441, %v1313
    %v1506 = vmul.f32 %v1442, %v1314
    %v1507 = vmul.f32 %v1443, %v1315
    %v1508 = vmul.f32 %v1444, %v1316
    %v1509 = vmul.f32 %v1445, %v1317
    %v1510 = vmul.f32 %v1446, %v1318
    %v1511 = vmul.f32 %v1447, %v1319
    %v1512 = vmul.f32 %v1448, %v1320
    %v1513 = vmul.f32 %v1449, %v1321
    %v1514 = vmul.f32 %v1450, %v1322
    %v1515 = vmul.f32 %v1451, %v1323
    %v1516 = vmul.f32 %v1452, %v1324
    %v1517 = vmul.f32 %v1453, %v1325
    %v1518 = vmul.f32 %v1454, %v1326
    %v1519 = vmul.f32 %v1455, %v1327
    %v1520 = vmul.f32 %v1456, %v1328
    %v1521 = vmul.f32 %v1457, %v1329
    %v1522 = vmul.f32 %v1458, %v1330
    %v1523 = vmul.f32 %v1459, %v1331
    %v1524 = vmul.f32 %v1460, %v1332
    %v1525 = vmul.f32 %v1461, %v1333
    %v1526 = vmul.f32 %v1462, %v1334
    %v1527 = vmul.f32 %v1463, %v1335
    %v1528 = vmul.f32 %v1464, %v1336
    %v1529 = vmul.f32 %v1465, %v1337
    %v1530 = vmul.f32 %v1466, %v1338
    %v1531 = vmul.f32 %v1467, %v1339
    %v1532 = vmul.f32 %v1468, %v1340
    %v1533 = vmul.f32 %v1469, %v1341
    %v1534 = vmul.f32 %v1470, %v1342
    %v1535 = vmul.f32 %v1471, %v1343
    %v1536 = vmul.f32 %v1472, %v1344
    %v1537 = vmul.f32 %v1473, %v1345
    %v1538 = vmul.f32 %v1474, %v1346
    %v1539 = vmul.f32 %v1475, %v1347
    %v1540 = vmul.f32 %v1476, %v1348
    %v1541 = vmul.f32 %v1477, %v1349
    %v1542 = vmul.f32 %v1478, %v1350
    %v1543 = vmul.f32 %v1479, %v1351
    %v1544 = vmul.f32 %v1480, %v1352
    %v1545 = vmul.f32 %v1481, %v1353
    %v1546 = vmul.f32 %v1482, %v1354
    %v1547 = vmul.f32 %v1483, %v1355
    %v1548 = vmul.f32 %v1484, %v1356
    %v1549 = vmul.f32 %v1485, %v1357
    %v1550 = vmul.f32 %v1486, %v1358
    %v1551 = vmul.f32 %v1487, %v1359
    %v1552 = vmul.f32 %v1488, %v1360
    %v1553 = vmul.f32 %v1489, %v1361
    %v1554 = vmul.f32 %v1490, %v1362
    %v1555 = vmul.f32 %v1491, %v1363
    %v1556 = vmul.f32 %v1492, %v1364
    %v1557 = vmul.f32 %v1493, %v1365
    %v1558 = vmul.f32 %v1494, %v1366
    %v1559 = vmul.f32 %v1495, %v1367
    %v1560 = vmul.f32 %v1496, %v1368
    %v1561 = vmul.f32 %v1497, %v1369
    %v1562 = vmul.f32 %v1498, %v1370
    %v1563 = vadd.f32 %v1371, %v1499
    %v1564 = vadd.f32 %v1372, %v1500
    %v1565 = vadd.f32 %v1373, %v1501
    %v1566 = vadd.f32 %v1374, %v1502
    %v1567 = vadd.f32 %v1375, %v1503
    %v1568 = vadd.f32 %v1376, %v1504
    %v1569 = vadd.f32 %v1377, %v1505
    %v1570 = vadd.f32 %v1378, %v1506
    %v1571 = vadd.f32 %v1379, %v1507
    %v1572 = vadd.f32 %v1380, %v1508
    %v1573 = vadd.f32 %v1381, %v1509
    %v1574 = vadd.f32 %v1382, %v1510
    %v1575 = vadd.f32 %v1383, %v1511
    %v1576 = vadd.f32 %v1384, %v1512
    %v1577 = vadd.f32 %v1385, %v1513
    %v1578 = vadd.f32 %v1386, %v1514
    %v1579 = vadd.f32 %v1387, %v1515
    %v1580 = vadd.f32 %v1388, %v1516
    %v1581 = vadd.f32 %v1389, %v1517
    %v1582 = vadd.f32 %v1390, %v1518
    %v1583 = vadd.f32 %v1391, %v1519
    %v1584 = vadd.f32 %v1392, %v1520
    %v1585 = vadd.f32 %v1393, %v1521
    %v1586 = vadd.f32 %v1394, %v1522
    %v1587 = vadd.f32 %v1395, %v1523
    %v1588 = vadd.f32 %v1396, %v1524
    %v1589 = vadd.f32 %v1397, %v1525
    %v1590 = vadd.f32 %v1398, %v1526
    %v1591 = vadd.f32 %v1399, %v1527
    %v1592 = vadd.f32 %v1400, %v1528
    %v1593 = vadd.f32 %v1401, %v1529
    %v1594 = vadd.f32 %v1402, %v1530
    %v1595 = vadd.f32 %v1403, %v1531
    %v1596 = vadd.f32 %v1404, %v1532
    %v1597 = vadd.f32 %v1405, %v1533
    %v1598 = vadd.f32 %v1406, %v1534
    %v1599 = vadd.f32 %v1407, %v1535
    %v1600 = vadd.f32 %v1408, %v1536
    %v1601 = vadd.f32 %v1409, %v1537
    %v1602 = vadd.f32 %v1410, %v1538
    %v1603 = vadd.f32 %v1411, %v1539
    %v1604 = vadd.f32 %v1412, %v1540
    %v1605 = vadd.f32 %v1413, %v1541
    %v1606 = vadd.f32 %v1414, %v1542
    %v1607 = vadd.f32 %v1415, %v1543
    %v1608 = vadd.f32 %v1416, %v1544
    %v1609 = vadd.f32 %v1417, %v1545
    %v1610 = vadd.f32 %v1418, %v1546
    %v1611 = vadd.f32 %v1419, %v1547
    %v1612 = vadd.f32 %v1420, %v1548
    %v1613 = vadd.f32 %v1421, %v1549
    %v1614 = vadd.f32 %v1422, %v1550
    %v1615 = vadd.f32 %v1423, %v1551
    %v1616 = vadd.f32 %v1424, %v1552
    %v1617 = vadd.f32 %v1425, %v1553
    %v1618 = vadd.f32 %v1426, %v1554
    %v1619 = vadd.f32 %v1427, %v1555
    %v1620 = vadd.f32 %v1428, %v1556
    %v1621 = vadd.f32 %v1429, %v1557
    %v1622 = vadd.f32 %v1430, %v1558
    %v1623 = vadd.f32 %v1431, %v1559
    %v1624 = vadd.f32 %v1432, %v1560
    %v1625 = vadd.f32 %v1433, %v1561
    %v1626 = vadd.f32 %v1434, %v1562
    %vm1627 = vcmask 244736
    %1628 = vst.msk [vmem:[#allocation2] sm:$0xff] %vm1627, %v1563
    %1629 = vst.msk [vmem:[#allocation2 + $0x8] sm:$0xff] %vm1627, %v1564
    %1630 = vst.msk [vmem:[#allocation2 + $0x10] sm:$0xff] %vm1627, %v1565
    %1631 = vst.msk [vmem:[#allocation2 + $0x18] sm:$0xff] %vm1627, %v1566
    %1632 = vst.msk [vmem:[#allocation2 + $0x20] sm:$0xff] %vm1627, %v1567
    %1633 = vst.msk [vmem:[#allocation2 + $0x28] sm:$0xff] %vm1627, %v1568
    %1634 = vst.msk [vmem:[#allocation2 + $0x30] sm:$0xff] %vm1627, %v1569
    %1635 = vst.msk [vmem:[#allocation2 + $0x38] sm:$0xff] %vm1627, %v1570
    %1636 = vst.msk [vmem:[#allocation2 + $0x40] sm:$0xff] %vm1627, %v1571
    %1637 = vst.msk [vmem:[#allocation2 + $0x48] sm:$0xff] %vm1627, %v1572
    %1638 = vst.msk [vmem:[#allocation2 + $0x50] sm:$0xff] %vm1627, %v1573
    %1639 = vst.msk [vmem:[#allocation2 + $0x58] sm:$0xff] %vm1627, %v1574
    %1640 = vst.msk [vmem:[#allocation2 + $0x60] sm:$0xff] %vm1627, %v1575
    %1641 = vst.msk [vmem:[#allocation2 + $0x68] sm:$0xff] %vm1627, %v1576
    %1642 = vst.msk [vmem:[#allocation2 + $0x70] sm:$0xff] %vm1627, %v1577
    %1643 = vst.msk [vmem:[#allocation2 + $0x78] sm:$0xff] %vm1627, %v1578
    %1644 = vst.msk [vmem:[#allocation2 + $0x80] sm:$0xff] %vm1627, %v1579
    %1645 = vst.msk [vmem:[#allocation2 + $0x88] sm:$0xff] %vm1627, %v1580
    %1646 = vst.msk [vmem:[#allocation2 + $0x90] sm:$0xff] %vm1627, %v1581
    %1647 = vst.msk [vmem:[#allocation2 + $0x98] sm:$0xff] %vm1627, %v1582
    %1648 = vst.msk [vmem:[#allocation2 + $0xa0] sm:$0xff] %vm1627, %v1583
    %1649 = vst.msk [vmem:[#allocation2 + $0xa8] sm:$0xff] %vm1627, %v1584
    %1650 = vst.msk [vmem:[#allocation2 + $0xb0] sm:$0xff] %vm1627, %v1585
    %1651 = vst.msk [vmem:[#allocation2 + $0xb8] sm:$0xff] %vm1627, %v1586
    %1652 = vst.msk [vmem:[#allocation2 + $0xc0] sm:$0xff] %vm1627, %v1587
    %1653 = vst.msk [vmem:[#allocation2 + $0xc8] sm:$0xff] %vm1627, %v1588
    %1654 = vst.msk [vmem:[#allocation2 + $0xd0] sm:$0xff] %vm1627, %v1589
    %1655 = vst.msk [vmem:[#allocation2 + $0xd8] sm:$0xff] %vm1627, %v1590
    %1656 = vst.msk [vmem:[#allocation2 + $0xe0] sm:$0xff] %vm1627, %v1591
    %1657 = vst.msk [vmem:[#allocation2 + $0xe8] sm:$0xff] %vm1627, %v1592
    %1658 = vst.msk [vmem:[#allocation2 + $0xf0] sm:$0xff] %vm1627, %v1593
    %1659 = vst.msk [vmem:[#allocation2 + $0xf8] sm:$0xff] %vm1627, %v1594
    %1660 = vst.msk [vmem:[#allocation2 + $0x100] sm:$0xff] %vm1627, %v1595
    %1661 = vst.msk [vmem:[#allocation2 + $0x108] sm:$0xff] %vm1627, %v1596
    %1662 = vst.msk [vmem:[#allocation2 + $0x110] sm:$0xff] %vm1627, %v1597
    %1663 = vst.msk [vmem:[#allocation2 + $0x118] sm:$0xff] %vm1627, %v1598
    %1664 = vst.msk [vmem:[#allocation2 + $0x120] sm:$0xff] %vm1627, %v1599
    %1665 = vst.msk [vmem:[#allocation2 + $0x128] sm:$0xff] %vm1627, %v1600
    %1666 = vst.msk [vmem:[#allocation2 + $0x130] sm:$0xff] %vm1627, %v1601
    %1667 = vst.msk [vmem:[#allocation2 + $0x138] sm:$0xff] %vm1627, %v1602
    %1668 = vst.msk [vmem:[#allocation2 + $0x140] sm:$0xff] %vm1627, %v1603
    %1669 = vst.msk [vmem:[#allocation2 + $0x148] sm:$0xff] %vm1627, %v1604
    %1670 = vst.msk [vmem:[#allocation2 + $0x150] sm:$0xff] %vm1627, %v1605
    %1671 = vst.msk [vmem:[#allocation2 + $0x158] sm:$0xff] %vm1627, %v1606
    %1672 = vst.msk [vmem:[#allocation2 + $0x160] sm:$0xff] %vm1627, %v1607
    %1673 = vst.msk [vmem:[#allocation2 + $0x168] sm:$0xff] %vm1627, %v1608
    %1674 = vst.msk [vmem:[#allocation2 + $0x170] sm:$0xff] %vm1627, %v1609
    %1675 = vst.msk [vmem:[#allocation2 + $0x178] sm:$0xff] %vm1627, %v1610
    %1676 = vst.msk [vmem:[#allocation2 + $0x180] sm:$0xff] %vm1627, %v1611
    %1677 = vst.msk [vmem:[#allocation2 + $0x188] sm:$0xff] %vm1627, %v1612
    %1678 = vst.msk [vmem:[#allocation2 + $0x190] sm:$0xff] %vm1627, %v1613
    %1679 = vst.msk [vmem:[#allocation2 + $0x198] sm:$0xff] %vm1627, %v1614
    %1680 = vst.msk [vmem:[#allocation2 + $0x1a0] sm:$0xff] %vm1627, %v1615
    %1681 = vst.msk [vmem:[#allocation2 + $0x1a8] sm:$0xff] %vm1627, %v1616
    %1682 = vst.msk [vmem:[#allocation2 + $0x1b0] sm:$0xff] %vm1627, %v1617
    %1683 = vst.msk [vmem:[#allocation2 + $0x1b8] sm:$0xff] %vm1627, %v1618
    %1684 = vst.msk [vmem:[#allocation2 + $0x1c0] sm:$0xff] %vm1627, %v1619
    %1685 = vst.msk [vmem:[#allocation2 + $0x1c8] sm:$0xff] %vm1627, %v1620
    %1686 = vst.msk [vmem:[#allocation2 + $0x1d0] sm:$0xff] %vm1627, %v1621
    %1687 = vst.msk [vmem:[#allocation2 + $0x1d8] sm:$0xff] %vm1627, %v1622
    %1688 = vst.msk [vmem:[#allocation2 + $0x1e0] sm:$0xff] %vm1627, %v1623
    %1689 = vst.msk [vmem:[#allocation2 + $0x1e8] sm:$0xff] %vm1627, %v1624
    %1690 = vst.msk [vmem:[#allocation2 + $0x1f0] sm:$0xff] %vm1627, %v1625
    %1691 = vst.msk [vmem:[#allocation2 + $0x1f8] sm:$0xff] %vm1627, %v1626
    // Predicated region
    $region14: #{tpu_custom_call.1} parent=1 // pred_check
      %p1692 = pneg %p12
    $region15: #{tpu_custom_call.1} parent=1 // pred_check_branch
      %1694 = sbr.rel (%p1692) target = $region17
    $region16: #{tpu_custom_call.1} parent=1 // pred_region
      %v1695 = vld [vmem:[#allocation2] sm:$0xff]
      %v1696 = vld [vmem:[#allocation2 + $0x8] sm:$0xff]
      %v1697 = vld [vmem:[#allocation2 + $0x10] sm:$0xff]
      %v1698 = vld [vmem:[#allocation2 + $0x18] sm:$0xff]
      %v1699 = vld [vmem:[#allocation2 + $0x20] sm:$0xff]
      %v1700 = vld [vmem:[#allocation2 + $0x28] sm:$0xff]
      %v1701 = vld [vmem:[#allocation2 + $0x30] sm:$0xff]
      %v1702 = vld [vmem:[#allocation2 + $0x38] sm:$0xff]
      %v1703 = vld [vmem:[#allocation2 + $0x40] sm:$0xff]
      %v1704 = vld [vmem:[#allocation2 + $0x48] sm:$0xff]
      %v1705 = vld [vmem:[#allocation2 + $0x50] sm:$0xff]
      %v1706 = vld [vmem:[#allocation2 + $0x58] sm:$0xff]
      %v1707 = vld [vmem:[#allocation2 + $0x60] sm:$0xff]
      %v1708 = vld [vmem:[#allocation2 + $0x68] sm:$0xff]
      %v1709 = vld [vmem:[#allocation2 + $0x70] sm:$0xff]
      %v1710 = vld [vmem:[#allocation2 + $0x78] sm:$0xff]
      %v1711 = vld [vmem:[#allocation2 + $0x80] sm:$0xff]
      %v1712 = vld [vmem:[#allocation2 + $0x88] sm:$0xff]
      %v1713 = vld [vmem:[#allocation2 + $0x90] sm:$0xff]
      %v1714 = vld [vmem:[#allocation2 + $0x98] sm:$0xff]
      %v1715 = vld [vmem:[#allocation2 + $0xa0] sm:$0xff]
      %v1716 = vld [vmem:[#allocation2 + $0xa8] sm:$0xff]
      %v1717 = vld [vmem:[#allocation2 + $0xb0] sm:$0xff]
      %v1718 = vld [vmem:[#allocation2 + $0xb8] sm:$0xff]
      %v1719 = vld [vmem:[#allocation2 + $0xc0] sm:$0xff]
      %v1720 = vld [vmem:[#allocation2 + $0xc8] sm:$0xff]
      %v1721 = vld [vmem:[#allocation2 + $0xd0] sm:$0xff]
      %v1722 = vld [vmem:[#allocation2 + $0xd8] sm:$0xff]
      %v1723 = vld [vmem:[#allocation2 + $0xe0] sm:$0xff]
      %v1724 = vld [vmem:[#allocation2 + $0xe8] sm:$0xff]
      %v1725 = vld [vmem:[#allocation2 + $0xf0] sm:$0xff]
      %v1726 = vld [vmem:[#allocation2 + $0xf8] sm:$0xff]
      %v1727 = vld [vmem:[#allocation2 + $0x100] sm:$0xff]
      %v1728 = vld [vmem:[#allocation2 + $0x108] sm:$0xff]
      %v1729 = vld [vmem:[#allocation2 + $0x110] sm:$0xff]
      %v1730 = vld [vmem:[#allocation2 + $0x118] sm:$0xff]
      %v1731 = vld [vmem:[#allocation2 + $0x120] sm:$0xff]
      %v1732 = vld [vmem:[#allocation2 + $0x128] sm:$0xff]
      %v1733 = vld [vmem:[#allocation2 + $0x130] sm:$0xff]
      %v1734 = vld [vmem:[#allocation2 + $0x138] sm:$0xff]
      %v1735 = vld [vmem:[#allocation2 + $0x140] sm:$0xff]
      %v1736 = vld [vmem:[#allocation2 + $0x148] sm:$0xff]
      %v1737 = vld [vmem:[#allocation2 + $0x150] sm:$0xff]
      %v1738 = vld [vmem:[#allocation2 + $0x158] sm:$0xff]
      %v1739 = vld [vmem:[#allocation2 + $0x160] sm:$0xff]
      %v1740 = vld [vmem:[#allocation2 + $0x168] sm:$0xff]
      %v1741 = vld [vmem:[#allocation2 + $0x170] sm:$0xff]
      %v1742 = vld [vmem:[#allocation2 + $0x178] sm:$0xff]
      %v1743 = vld [vmem:[#allocation2 + $0x180] sm:$0xff]
      %v1744 = vld [vmem:[#allocation2 + $0x188] sm:$0xff]
      %v1745 = vld [vmem:[#allocation2 + $0x190] sm:$0xff]
      %v1746 = vld [vmem:[#allocation2 + $0x198] sm:$0xff]
      %v1747 = vld [vmem:[#allocation2 + $0x1a0] sm:$0xff]
      %v1748 = vld [vmem:[#allocation2 + $0x1a8] sm:$0xff]
      %v1749 = vld [vmem:[#allocation2 + $0x1b0] sm:$0xff]
      %v1750 = vld [vmem:[#allocation2 + $0x1b8] sm:$0xff]
      %v1751 = vld [vmem:[#allocation2 + $0x1c0] sm:$0xff]
      %v1752 = vld [vmem:[#allocation2 + $0x1c8] sm:$0xff]
      %v1753 = vld [vmem:[#allocation2 + $0x1d0] sm:$0xff]
      %v1754 = vld [vmem:[#allocation2 + $0x1d8] sm:$0xff]
      %v1755 = vld [vmem:[#allocation2 + $0x1e0] sm:$0xff]
      %v1756 = vld [vmem:[#allocation2 + $0x1e8] sm:$0xff]
      %v1757 = vld [vmem:[#allocation2 + $0x1f0] sm:$0xff]
      %v1758 = vld [vmem:[#allocation2 + $0x1f8] sm:$0xff]
      %v1759 = vsel %vm1627, %v1695, 0.0
      %v1760 = vsel %vm1627, %v1696, 0.0
      %v1761 = vadd.f32 %v1759, %v1760
      %v1762 = vsel %vm1627, %v1697, 0.0
      %v1763 = vadd.f32 %v1761, %v1762
      %v1764 = vsel %vm1627, %v1698, 0.0
      %v1765 = vadd.f32 %v1763, %v1764
      %v1766 = vsel %vm1627, %v1699, 0.0
      %v1767 = vadd.f32 %v1765, %v1766
      %v1768 = vsel %vm1627, %v1700, 0.0
      %v1769 = vadd.f32 %v1767, %v1768
      %v1770 = vsel %vm1627, %v1701, 0.0
      %v1771 = vadd.f32 %v1769, %v1770
      %v1772 = vsel %vm1627, %v1702, 0.0
      %v1773 = vadd.f32 %v1771, %v1772
      %v1774 = vsel %vm1627, %v1703, 0.0
      %v1775 = vadd.f32 %v1773, %v1774
      %v1776 = vsel %vm1627, %v1704, 0.0
      %v1777 = vadd.f32 %v1775, %v1776
      %v1778 = vsel %vm1627, %v1705, 0.0
      %v1779 = vadd.f32 %v1777, %v1778
      %v1780 = vsel %vm1627, %v1706, 0.0
      %v1781 = vadd.f32 %v1779, %v1780
      %v1782 = vsel %vm1627, %v1707, 0.0
      %v1783 = vadd.f32 %v1781, %v1782
      %v1784 = vsel %vm1627, %v1708, 0.0
      %v1785 = vadd.f32 %v1783, %v1784
      %v1786 = vsel %vm1627, %v1709, 0.0
      %v1787 = vadd.f32 %v1785, %v1786
      %v1788 = vsel %vm1627, %v1710, 0.0
      %v1789 = vadd.f32 %v1787, %v1788
      %v1790 = vsel %vm1627, %v1711, 0.0
      %v1791 = vadd.f32 %v1789, %v1790
      %v1792 = vsel %vm1627, %v1712, 0.0
      %v1793 = vadd.f32 %v1791, %v1792
      %v1794 = vsel %vm1627, %v1713, 0.0
      %v1795 = vadd.f32 %v1793, %v1794
      %v1796 = vsel %vm1627, %v1714, 0.0
      %v1797 = vadd.f32 %v1795, %v1796
      %v1798 = vsel %vm1627, %v1715, 0.0
      %v1799 = vadd.f32 %v1797, %v1798
      %v1800 = vsel %vm1627, %v1716, 0.0
      %v1801 = vadd.f32 %v1799, %v1800
      %v1802 = vsel %vm1627, %v1717, 0.0
      %v1803 = vadd.f32 %v1801, %v1802
      %v1804 = vsel %vm1627, %v1718, 0.0
      %v1805 = vadd.f32 %v1803, %v1804
      %v1806 = vsel %vm1627, %v1719, 0.0
      %v1807 = vadd.f32 %v1805, %v1806
      %v1808 = vsel %vm1627, %v1720, 0.0
      %v1809 = vadd.f32 %v1807, %v1808
      %v1810 = vsel %vm1627, %v1721, 0.0
      %v1811 = vadd.f32 %v1809, %v1810
      %v1812 = vsel %vm1627, %v1722, 0.0
      %v1813 = vadd.f32 %v1811, %v1812
      %v1814 = vsel %vm1627, %v1723, 0.0
      %v1815 = vadd.f32 %v1813, %v1814
      %v1816 = vsel %vm1627, %v1724, 0.0
      %v1817 = vadd.f32 %v1815, %v1816
      %v1818 = vsel %vm1627, %v1725, 0.0
      %v1819 = vadd.f32 %v1817, %v1818
      %v1820 = vsel %vm1627, %v1726, 0.0
      %v1821 = vadd.f32 %v1819, %v1820
      %v1822 = vsel %vm1627, %v1727, 0.0
      %v1823 = vadd.f32 %v1821, %v1822
      %v1824 = vsel %vm1627, %v1728, 0.0
      %v1825 = vadd.f32 %v1823, %v1824
      %v1826 = vsel %vm1627, %v1729, 0.0
      %v1827 = vadd.f32 %v1825, %v1826
      %v1828 = vsel %vm1627, %v1730, 0.0
      %v1829 = vadd.f32 %v1827, %v1828
      %v1830 = vsel %vm1627, %v1731, 0.0
      %v1831 = vadd.f32 %v1829, %v1830
      %v1832 = vsel %vm1627, %v1732, 0.0
      %v1833 = vadd.f32 %v1831, %v1832
      %v1834 = vsel %vm1627, %v1733, 0.0
      %v1835 = vadd.f32 %v1833, %v1834
      %v1836 = vsel %vm1627, %v1734, 0.0
      %v1837 = vadd.f32 %v1835, %v1836
      %v1838 = vsel %vm1627, %v1735, 0.0
      %v1839 = vadd.f32 %v1837, %v1838
      %v1840 = vsel %vm1627, %v1736, 0.0
      %v1841 = vadd.f32 %v1839, %v1840
      %v1842 = vsel %vm1627, %v1737, 0.0
      %v1843 = vadd.f32 %v1841, %v1842
      %v1844 = vsel %vm1627, %v1738, 0.0
      %v1845 = vadd.f32 %v1843, %v1844
      %v1846 = vsel %vm1627, %v1739, 0.0
      %v1847 = vadd.f32 %v1845, %v1846
      %v1848 = vsel %vm1627, %v1740, 0.0
      %v1849 = vadd.f32 %v1847, %v1848
      %v1850 = vsel %vm1627, %v1741, 0.0
      %v1851 = vadd.f32 %v1849, %v1850
      %v1852 = vsel %vm1627, %v1742, 0.0
      %v1853 = vadd.f32 %v1851, %v1852
      %v1854 = vsel %vm1627, %v1743, 0.0
      %v1855 = vadd.f32 %v1853, %v1854
      %v1856 = vsel %vm1627, %v1744, 0.0
      %v1857 = vadd.f32 %v1855, %v1856
      %v1858 = vsel %vm1627, %v1745, 0.0
      %v1859 = vadd.f32 %v1857, %v1858
      %v1860 = vsel %vm1627, %v1746, 0.0
      %v1861 = vadd.f32 %v1859, %v1860
      %v1862 = vsel %vm1627, %v1747, 0.0
      %v1863 = vadd.f32 %v1861, %v1862
      %v1864 = vsel %vm1627, %v1748, 0.0
      %v1865 = vadd.f32 %v1863, %v1864
      %v1866 = vsel %vm1627, %v1749, 0.0
      %v1867 = vadd.f32 %v1865, %v1866
      %v1868 = vsel %vm1627, %v1750, 0.0
      %v1869 = vadd.f32 %v1867, %v1868
      %v1870 = vsel %vm1627, %v1751, 0.0
      %v1871 = vadd.f32 %v1869, %v1870
      %v1872 = vsel %vm1627, %v1752, 0.0
      %v1873 = vadd.f32 %v1871, %v1872
      %v1874 = vsel %vm1627, %v1753, 0.0
      %v1875 = vadd.f32 %v1873, %v1874
      %v1876 = vsel %vm1627, %v1754, 0.0
      %v1877 = vadd.f32 %v1875, %v1876
      %v1878 = vsel %vm1627, %v1755, 0.0
      %v1879 = vadd.f32 %v1877, %v1878
      %v1880 = vsel %vm1627, %v1756, 0.0
      %v1881 = vadd.f32 %v1879, %v1880
      %v1882 = vsel %vm1627, %v1757, 0.0
      %v1883 = vadd.f32 %v1881, %v1882
      %v1884 = vsel %vm1627, %v1758, 0.0
      %v1885 = vadd.f32 %v1883, %v1884
      %1886 = vadd.xlane.f32.xlu0 %v1885
      %v1887 = vpop.xlane.xlu0 %1886
      %v1888 = vrot.slane %v1887, 4
      %v1889 = vadd.f32 %v1887, %v1888
      %v1890 = vrot.slane %v1889, 2
      %v1891 = vadd.f32 %v1889, %v1890
      %v1892 = vrot.slane %v1891, 1
      %v1893 = vadd.f32 %v1891, %v1892
      %s1894 = vtos %v1893
      %s1895 = scalar_lea.smem [#allocation3], 0
      %1896 = sst [smem:[%s1895]] %s1894
    $region17: #{tpu_custom_call.1} parent=1 // pred_fallthru
      _
    // Predicated region
    $region18: #{tpu_custom_call.1} parent=1 // pred_check
      _
    $region19: #{tpu_custom_call.1} parent=1 // pred_check_branch
      %1898 = sbr.rel (0) target = $region21
    $region20: #{tpu_custom_call.1} parent=1 // pred_region
      %s1900 = ssub.s32 16, 16
      %1901 = vsyncadd [#allocation4], %s1900
      %1904 = dma.smem_to_hbm [#allocation3], 16, %s2, [#allocation4]
    $region21: #{tpu_custom_call.1} parent=1 // pred_fallthru
      _
    // Predicated region
    $region22: #{tpu_custom_call.1} parent=1 // pred_check
      _
    $region23: #{tpu_custom_call.1} parent=1 // pred_check_branch
      %1906 = sbr.rel (0) target = $region25
    $region24: #{tpu_custom_call.1} parent=1 // pred_region
      %1907 = dma.done [#allocation4], 16
    $region25: #{tpu_custom_call.1} parent=1 // pred_fallthru
      _
    %1908 = sfence
    %1909 = vsyncpa [#allocation4], 1

</llo_original>
